<compile_context>
chip_gen: v6e
topology: v6e:2x2x1
jax: 0.10.0
libtpu: 0.0.40
codegen_flags: <defaults>
</compile_context>

<pallas_src>
import functools

import jax
import jax.numpy as jnp
from jax.experimental import pallas as pl
from jax.experimental.pallas import tpu as pltpu

F32 = jnp.float32
BF16 = jnp.bfloat16


# --------------------------------------------------------------------------
# Fused kernel: one batch element per grid step.
# --------------------------------------------------------------------------
def _resnet_block_kernel(x_ref, scale_ref, shift_ref,
                         ws1_ref, b1_ref, g1_ref, be1_ref,
                         ws2_ref, b2_ref, g2_ref, be2_ref,
                         resw_ref, resb_ref, mg_ref, mgt_ref,
                         o_ref, *, groups):
    xb = x_ref[0]                                   # (C, L) f32
    C, L = xb.shape
    O = b1_ref.shape[0]
    G = O // groups
    inv_n = 1.0 / (G * L)

    mg = mg_ref[...]                                # (groups, O) one-hot, f32
    mgt = mgt_ref[...]                              # (O, groups)

    def conv3(a, ws_bf16, bias):
        """k=3 / pad=1 conv as a single MXU matmul (taps stacked along sublanes)."""
        z = jnp.zeros((a.shape[0], 1), a.dtype)
        a_lm1 = jnp.concatenate([z, a[:, :L - 1]], axis=1)    # x[l-1], zero at l=0
        a_lp1 = jnp.concatenate([a[:, 1:], z], axis=1)        # x[l+1], zero at l=L-1
        a_cat = jnp.concatenate([a_lm1, a, a_lp1], axis=0)    # (3R, L), (k,c) ordered
        return jnp.dot(ws_bf16, a_cat.astype(BF16),
                       preferred_element_type=F32) + bias     # (O, L) f32

    def group_norm(h, gamma, beta):
        """Per-group stats: lane reductions + tiny one-hot dots; all in f32."""
        s = jnp.sum(h, axis=1, keepdims=True)                 # (O, 1)
        sq = jnp.sum(h * h, axis=1, keepdims=True)            # (O, 1)
        g_mean = jnp.dot(mg, s, preferred_element_type=F32) * inv_n      # (groups, 1)
        g_msq = jnp.dot(mg, sq, preferred_element_type=F32) * inv_n
        g_var = jnp.maximum(g_msq - g_mean * g_mean, 0.0)     # guard cancellation
        g_inv = jax.lax.rsqrt(g_var + 1e-5)
        mean_c = jnp.dot(mgt, g_mean, preferred_element_type=F32)        # (O, 1)
        inv_c = jnp.dot(mgt, g_inv, preferred_element_type=F32)          # (O, 1)
        return (h - mean_c) * inv_c * gamma + beta

    # ---- block1: WS-conv -> GroupNorm -> FiLM -> SiLU ----
    h = conv3(xb, ws1_ref[...], b1_ref[...])
    y = group_norm(h, g1_ref[...], be1_ref[...])
    y = y * (scale_ref[0] + 1.0) + shift_ref[0]
    h1 = y * jax.nn.sigmoid(y)                                # (O, L)

    # ---- block2: WS-conv -> GroupNorm -> SiLU ----
    h = conv3(h1, ws2_ref[...], b2_ref[...])
    y = group_norm(h, g2_ref[...], be2_ref[...])
    h2 = y * jax.nn.sigmoid(y)

    # ---- residual 1x1 conv + add ----
    res = jnp.dot(resw_ref[...], xb.astype(BF16),
                  preferred_element_type=F32) + resb_ref[...]
    o_ref[0] = h2 + res


# --------------------------------------------------------------------------
# Wrapper
# --------------------------------------------------------------------------
def resnet_block_forward(params, x, time_emb, class_emb, *, groups=8):
    B, C, L = x.shape
    O = params["conv1_w"].shape[0]
    assert O % groups == 0

    # ---- conditioning MLP (SiLU -> Linear) in plain JAX: tiny, XLA fuses it ----
    cond = jnp.concatenate([time_emb, class_emb], axis=-1)     # (B, Din)
    cond = cond * jax.nn.sigmoid(cond)
    mlp = cond @ params["mlp_w"].T + params["mlp_b"]           # (B, 2*O)
    scale = mlp[:, :O][..., None].astype(F32)                  # (B, O, 1)
    shift = mlp[:, O:][..., None].astype(F32)

    # ---- weight standardization hoisted here (done once, f32 stats, bf16 out) ----
    def ws_flat(w):                       # (O, Cin, 3) -> (O, 3*Cin), (o, k, c) order
        o, c, k = w.shape
        w2 = jnp.transpose(w, (0, 2, 1)).reshape(o, k * c)
        m = jnp.mean(w2, axis=1, keepdims=True)
        v = jnp.mean((w2 - m) ** 2, axis=1, keepdims=True)     # biased variance
        return ((w2 - m) * jax.lax.rsqrt(v + 1e-5)).astype(BF16)   # eps for f32 input

    ws1 = ws_flat(params["conv1_w"])                           # (O, 3C)  bf16
    ws2 = ws_flat(params["conv2_w"])                           # (O, 3O)  bf16
    resw = params["res_w"].astype(BF16)                        # (O, C)   bf16

    col = lambda v: v[:, None].astype(F32)
    b1, g1, be1 = col(params["conv1_b"]), col(params["gn1_gamma"]), col(params["gn1_beta"])
    b2, g2, be2 = col(params["conv2_b"]), col(params["gn2_gamma"]), col(params["gn2_beta"])
    resb = col(params["res_b"])

    # group membership one-hot matrices (tiny, static; computed once)
    G = O // groups
    grp = jnp.arange(O, dtype=jnp.int32) // G
    mg = (jnp.arange(groups, dtype=jnp.int32)[:, None] == grp[None, :]).astype(F32)  # (groups, O)
    mgt = mg.T                                                                        # (O, groups)

    rep2 = lambda shape: pl.BlockSpec(shape, lambda b: (0, 0))   # replicated params
    kernel = functools.partial(_resnet_block_kernel, groups=groups)

    return pl.pallas_call(
        kernel,
        out_shape=jax.ShapeDtypeStruct((B, O, L), F32),
        grid=(B,),
        in_specs=[
            pl.BlockSpec((1, C, L), lambda b: (b, 0, 0)),        # x
            pl.BlockSpec((1, O, 1), lambda b: (b, 0, 0)),        # scale
            pl.BlockSpec((1, O, 1), lambda b: (b, 0, 0)),        # shift
            rep2((O, 3 * C)), rep2((O, 1)), rep2((O, 1)), rep2((O, 1)),   # ws1,b1,g1,be1
            rep2((O, 3 * O)), rep2((O, 1)), rep2((O, 1)), rep2((O, 1)),   # ws2,b2,g2,be2
            rep2((O, C)), rep2((O, 1)),                                   # resw, resb
            rep2((groups, O)), rep2((O, groups)),                         # mg, mgt
        ],
        out_specs=pl.BlockSpec((1, O, L), lambda b: (b, 0, 0)),
        compiler_params=pltpu.CompilerParams(
            dimension_semantics=("parallel",),
        ),
    )(x, scale, shift, ws1, b1, g1, be1, ws2, b2, g2, be2, resw, resb, mg, mgt)


# --------------------------------------------------------------------------
# Deterministic parameter init (shapes follow ResnetBlock.__init__)
# --------------------------------------------------------------------------
def init_params(key, dim, dim_out, time_emb_dim, classes_emb_dim):
    ks = jax.random.split(key, 12)

    def nrm(k, shape, s=0.1):
        return (s * jax.random.normal(k, shape)).astype(F32)

    din = time_emb_dim + classes_emb_dim
    return {
        "mlp_w": nrm(ks[0], (2 * dim_out, din)),       # Linear(din, 2*dim_out)
        "mlp_b": nrm(ks[1], (2 * dim_out,)),
        "conv1_w": nrm(ks[2], (dim_out, dim, 3)),      # WSConv1d(dim, dim_out, 3)
        "conv1_b": nrm(ks[3], (dim_out,)),
        "gn1_gamma": 1.0 + nrm(ks[4], (dim_out,)),     # GroupNorm affine
        "gn1_beta": nrm(ks[5], (dim_out,)),
        "conv2_w": nrm(ks[6], (dim_out, dim_out, 3)),  # WSConv1d(dim_out, dim_out, 3)
        "conv2_b": nrm(ks[7], (dim_out,)),
        "gn2_gamma": 1.0 + nrm(ks[8], (dim_out,)),
        "gn2_beta": nrm(ks[9], (dim_out,)),
        "res_w": nrm(ks[10], (dim_out, dim)),          # Conv1d(dim, dim_out, 1)
        "res_b": nrm(ks[11], (dim_out,)),
    }


if __name__ == "__main__":
    B, dim, dim_out, L = 2, 4, 16, 16
    time_emb_dim, classes_emb_dim, groups = 8, 8, 8

    key = jax.random.PRNGKey(0)
    kx, kt, kc, kp = jax.random.split(key, 4)
    x = jax.random.normal(kx, (B, dim, L), dtype=F32)
    time_emb = jax.random.normal(kt, (B, time_emb_dim), dtype=F32)
    class_emb = jax.random.normal(kc, (B, classes_emb_dim), dtype=F32)
    params = init_params(kp, dim, dim_out, time_emb_dim, classes_emb_dim)

    out = resnet_block_forward(params, x, time_emb, class_emb, groups=groups)
    jax.block_until_ready(out)
    assert out.shape == (B, dim_out, L) and out.dtype == F32
    print("KERNEL_OK")
</pallas_src>

<mosaic_0001>
module attributes {stable_mosaic.version = 11 : i64} {
  func.func @_resnet_block_kernel(%arg0: i32, %arg1: memref<1x4x16xf32, #tpu.memory_space<vmem>>, %arg2: memref<1x16x1xf32, #tpu.memory_space<vmem>>, %arg3: memref<1x16x1xf32, #tpu.memory_space<vmem>>, %arg4: memref<16x12xbf16, #tpu.memory_space<vmem>>, %arg5: memref<16x1xf32, #tpu.memory_space<vmem>>, %arg6: memref<16x1xf32, #tpu.memory_space<vmem>>, %arg7: memref<16x1xf32, #tpu.memory_space<vmem>>, %arg8: memref<16x48xbf16, #tpu.memory_space<vmem>>, %arg9: memref<16x1xf32, #tpu.memory_space<vmem>>, %arg10: memref<16x1xf32, #tpu.memory_space<vmem>>, %arg11: memref<16x1xf32, #tpu.memory_space<vmem>>, %arg12: memref<16x4xbf16, #tpu.memory_space<vmem>>, %arg13: memref<16x1xf32, #tpu.memory_space<vmem>>, %arg14: memref<8x16xf32, #tpu.memory_space<vmem>>, %arg15: memref<16x8xf32, #tpu.memory_space<vmem>>, %arg16: memref<1x16x16xf32, #tpu.memory_space<vmem>>) attributes {dimension_semantics = [#tpu.dimension_semantics<parallel>], iteration_bounds = array<i64: 2>, scalar_prefetch = 0 : i64, scratch_operands = 0 : i64, tpu.core_type = #tpu.core_type<tc>, window_params = [{transform_indices = @transform_0, window_bounds = array<i64: 1, 4, 16>}, {transform_indices = @transform_1, window_bounds = array<i64: 1, 16, 1>}, {transform_indices = @transform_2, window_bounds = array<i64: 1, 16, 1>}, {pipeline_mode = #tpu.pipeline_mode<synchronous>, transform_indices = @transform_3, window_bounds = array<i64: 16, 12>}, {pipeline_mode = #tpu.pipeline_mode<synchronous>, transform_indices = @transform_4, window_bounds = array<i64: 16, 1>}, {pipeline_mode = #tpu.pipeline_mode<synchronous>, transform_indices = @transform_5, window_bounds = array<i64: 16, 1>}, {pipeline_mode = #tpu.pipeline_mode<synchronous>, transform_indices = @transform_6, window_bounds = array<i64: 16, 1>}, {pipeline_mode = #tpu.pipeline_mode<synchronous>, transform_indices = @transform_7, window_bounds = array<i64: 16, 48>}, {pipeline_mode = #tpu.pipeline_mode<synchronous>, transform_indices = @transform_8, window_bounds = array<i64: 16, 1>}, {pipeline_mode = #tpu.pipeline_mode<synchronous>, transform_indices = @transform_9, window_bounds = array<i64: 16, 1>}, {pipeline_mode = #tpu.pipeline_mode<synchronous>, transform_indices = @transform_10, window_bounds = array<i64: 16, 1>}, {pipeline_mode = #tpu.pipeline_mode<synchronous>, transform_indices = @transform_11, window_bounds = array<i64: 16, 4>}, {pipeline_mode = #tpu.pipeline_mode<synchronous>, transform_indices = @transform_12, window_bounds = array<i64: 16, 1>}, {pipeline_mode = #tpu.pipeline_mode<synchronous>, transform_indices = @transform_13, window_bounds = array<i64: 8, 16>}, {pipeline_mode = #tpu.pipeline_mode<synchronous>, transform_indices = @transform_14, window_bounds = array<i64: 16, 8>}, {transform_indices = @transform_15, window_bounds = array<i64: 1, 16, 16>}]} {
    %c0 = arith.constant 0 : index
    %c0_0 = arith.constant 0 : index
    %c0_1 = arith.constant 0 : index
    %0 = vector.load %arg1[%c0, %c0_0, %c0_1] : memref<1x4x16xf32, #tpu.memory_space<vmem>>, vector<1x4x16xf32>
    %1 = vector.shape_cast %0 : vector<1x4x16xf32> to vector<4x16xf32>
    %c0_2 = arith.constant 0 : index
    %c0_3 = arith.constant 0 : index
    %2 = vector.load %arg14[%c0_2, %c0_3] : memref<8x16xf32, #tpu.memory_space<vmem>>, vector<8x16xf32>
    %c0_4 = arith.constant 0 : index
    %c0_5 = arith.constant 0 : index
    %3 = vector.load %arg15[%c0_4, %c0_5] : memref<16x8xf32, #tpu.memory_space<vmem>>, vector<16x8xf32>
    %c0_6 = arith.constant 0 : index
    %c0_7 = arith.constant 0 : index
    %4 = vector.load %arg4[%c0_6, %c0_7] : memref<16x12xbf16, #tpu.memory_space<vmem>>, vector<16x12xbf16>
    %c0_8 = arith.constant 0 : index
    %c0_9 = arith.constant 0 : index
    %5 = vector.load %arg5[%c0_8, %c0_9] : memref<16x1xf32, #tpu.memory_space<vmem>>, vector<16x1xf32>
    %cst = arith.constant 0.000000e+00 : f32
    %6 = vector.broadcast %cst : f32 to vector<4x1xf32>
    %7 = vector.extract_strided_slice %1 {offsets = [0, 0], sizes = [4, 15], strides = [1, 1]} : vector<4x16xf32> to vector<4x15xf32>
    %8 = tpu.concatenate %6, %7 in 1 : vector<4x1xf32>, vector<4x15xf32> -> vector<4x16xf32>
    %9 = vector.extract_strided_slice %1 {offsets = [0, 1], sizes = [4, 15], strides = [1, 1]} : vector<4x16xf32> to vector<4x15xf32>
    %10 = tpu.concatenate %9, %6 in 1 : vector<4x15xf32>, vector<4x1xf32> -> vector<4x16xf32>
    %11 = tpu.concatenate %8, %1, %10 in 0 : vector<4x16xf32>, vector<4x16xf32>, vector<4x16xf32> -> vector<12x16xf32>
    %12 = arith.truncf %11 : vector<12x16xf32> to vector<12x16xbf16>
    %cst_10 = arith.constant dense<0.000000e+00> : vector<16x16xf32>
    %13 = tpu.matmul %4, %12, %cst_10 {dimension_numbers = #tpu.dot_dimension_numbers<[1], [0], [0], [1], [0, 0, 1, 1], [], []>} : vector<16x12xbf16>, vector<12x16xbf16>, vector<16x16xf32> -> vector<16x16xf32>
    %14 = vector.broadcast %5 : vector<16x1xf32> to vector<16x16xf32>
    %15 = arith.addf %13, %14 : vector<16x16xf32>
    %c0_11 = arith.constant 0 : index
    %c0_12 = arith.constant 0 : index
    %16 = vector.load %arg6[%c0_11, %c0_12] : memref<16x1xf32, #tpu.memory_space<vmem>>, vector<16x1xf32>
    %c0_13 = arith.constant 0 : index
    %c0_14 = arith.constant 0 : index
    %17 = vector.load %arg7[%c0_13, %c0_14] : memref<16x1xf32, #tpu.memory_space<vmem>>, vector<16x1xf32>
    %cst_15 = arith.constant dense<0.000000e+00> : vector<16xf32>
    %18 = vector.multi_reduction <add>, %15, %cst_15 [1] : vector<16x16xf32> to vector<16xf32>
    %19 = vector.shape_cast %18 : vector<16xf32> to vector<16x1xf32>
    %20 = arith.mulf %15, %15 : vector<16x16xf32>
    %cst_16 = arith.constant dense<0.000000e+00> : vector<16xf32>
    %21 = vector.multi_reduction <add>, %20, %cst_16 [1] : vector<16x16xf32> to vector<16xf32>
    %22 = vector.shape_cast %21 : vector<16xf32> to vector<16x1xf32>
    %cst_17 = arith.constant dense<0.000000e+00> : vector<8x1xf32>
    %23 = tpu.matmul %2, %19, %cst_17 {dimension_numbers = #tpu.dot_dimension_numbers<[1], [0], [0], [1], [0, 0, 1, 1], [], []>} : vector<8x16xf32>, vector<16x1xf32>, vector<8x1xf32> -> vector<8x1xf32>
    %cst_18 = arith.constant 3.125000e-02 : f32
    %24 = vector.broadcast %cst_18 : f32 to vector<8x1xf32>
    %25 = arith.mulf %23, %24 : vector<8x1xf32>
    %cst_19 = arith.constant dense<0.000000e+00> : vector<8x1xf32>
    %26 = tpu.matmul %2, %22, %cst_19 {dimension_numbers = #tpu.dot_dimension_numbers<[1], [0], [0], [1], [0, 0, 1, 1], [], []>} : vector<8x16xf32>, vector<16x1xf32>, vector<8x1xf32> -> vector<8x1xf32>
    %cst_20 = arith.constant 3.125000e-02 : f32
    %27 = vector.broadcast %cst_20 : f32 to vector<8x1xf32>
    %28 = arith.mulf %26, %27 : vector<8x1xf32>
    %29 = arith.mulf %25, %25 : vector<8x1xf32>
    %30 = arith.subf %28, %29 : vector<8x1xf32>
    %cst_21 = arith.constant 0.000000e+00 : f32
    %31 = vector.broadcast %cst_21 : f32 to vector<8x1xf32>
    %32 = arith.maximumf %30, %31 : vector<8x1xf32>
    %cst_22 = arith.constant 9.99999974E-6 : f32
    %33 = vector.broadcast %cst_22 : f32 to vector<8x1xf32>
    %34 = arith.addf %32, %33 : vector<8x1xf32>
    %35 = math.rsqrt %34 : vector<8x1xf32>
    %cst_23 = arith.constant dense<0.000000e+00> : vector<16x1xf32>
    %36 = tpu.matmul %3, %25, %cst_23 {dimension_numbers = #tpu.dot_dimension_numbers<[1], [0], [0], [1], [0, 0, 1, 1], [], []>} : vector<16x8xf32>, vector<8x1xf32>, vector<16x1xf32> -> vector<16x1xf32>
    %cst_24 = arith.constant dense<0.000000e+00> : vector<16x1xf32>
    %37 = tpu.matmul %3, %35, %cst_24 {dimension_numbers = #tpu.dot_dimension_numbers<[1], [0], [0], [1], [0, 0, 1, 1], [], []>} : vector<16x8xf32>, vector<8x1xf32>, vector<16x1xf32> -> vector<16x1xf32>
    %38 = vector.broadcast %36 : vector<16x1xf32> to vector<16x16xf32>
    %39 = arith.subf %15, %38 : vector<16x16xf32>
    %40 = vector.broadcast %37 : vector<16x1xf32> to vector<16x16xf32>
    %41 = arith.mulf %39, %40 : vector<16x16xf32>
    %42 = vector.broadcast %16 : vector<16x1xf32> to vector<16x16xf32>
    %43 = arith.mulf %41, %42 : vector<16x16xf32>
    %44 = vector.broadcast %17 : vector<16x1xf32> to vector<16x16xf32>
    %45 = arith.addf %43, %44 : vector<16x16xf32>
    %c0_25 = arith.constant 0 : index
    %c0_26 = arith.constant 0 : index
    %c0_27 = arith.constant 0 : index
    %46 = vector.load %arg2[%c0_25, %c0_26, %c0_27] : memref<1x16x1xf32, #tpu.memory_space<vmem>>, vector<1x16x1xf32>
    %47 = vector.shape_cast %46 : vector<1x16x1xf32> to vector<16x1xf32>
    %cst_28 = arith.constant 1.000000e+00 : f32
    %48 = vector.broadcast %cst_28 : f32 to vector<16x1xf32>
    %49 = arith.addf %47, %48 : vector<16x1xf32>
    %50 = vector.broadcast %49 : vector<16x1xf32> to vector<16x16xf32>
    %51 = arith.mulf %45, %50 : vector<16x16xf32>
    %c0_29 = arith.constant 0 : index
    %c0_30 = arith.constant 0 : index
    %c0_31 = arith.constant 0 : index
    %52 = vector.load %arg3[%c0_29, %c0_30, %c0_31] : memref<1x16x1xf32, #tpu.memory_space<vmem>>, vector<1x16x1xf32>
    %53 = vector.shape_cast %52 : vector<1x16x1xf32> to vector<16x1xf32>
    %54 = vector.broadcast %53 : vector<16x1xf32> to vector<16x16xf32>
    %55 = arith.addf %51, %54 : vector<16x16xf32>
    %56 = arith.negf %55 : vector<16x16xf32>
    %57 = math.exp %56 : vector<16x16xf32>
    %cst_32 = arith.constant 1.000000e+00 : f32
    %58 = vector.broadcast %cst_32 : f32 to vector<16x16xf32>
    %59 = arith.addf %58, %57 : vector<16x16xf32>
    %60 = arith.divf %58, %59 : vector<16x16xf32>
    %61 = arith.mulf %55, %60 : vector<16x16xf32>
    %c0_33 = arith.constant 0 : index
    %c0_34 = arith.constant 0 : index
    %62 = vector.load %arg8[%c0_33, %c0_34] : memref<16x48xbf16, #tpu.memory_space<vmem>>, vector<16x48xbf16>
    %c0_35 = arith.constant 0 : index
    %c0_36 = arith.constant 0 : index
    %63 = vector.load %arg9[%c0_35, %c0_36] : memref<16x1xf32, #tpu.memory_space<vmem>>, vector<16x1xf32>
    %cst_37 = arith.constant 0.000000e+00 : f32
    %64 = vector.broadcast %cst_37 : f32 to vector<16x1xf32>
    %65 = vector.extract_strided_slice %61 {offsets = [0, 0], sizes = [16, 15], strides = [1, 1]} : vector<16x16xf32> to vector<16x15xf32>
    %66 = tpu.concatenate %64, %65 in 1 : vector<16x1xf32>, vector<16x15xf32> -> vector<16x16xf32>
    %67 = vector.extract_strided_slice %61 {offsets = [0, 1], sizes = [16, 15], strides = [1, 1]} : vector<16x16xf32> to vector<16x15xf32>
    %68 = tpu.concatenate %67, %64 in 1 : vector<16x15xf32>, vector<16x1xf32> -> vector<16x16xf32>
    %69 = tpu.concatenate %66, %61, %68 in 0 : vector<16x16xf32>, vector<16x16xf32>, vector<16x16xf32> -> vector<48x16xf32>
    %70 = arith.truncf %69 : vector<48x16xf32> to vector<48x16xbf16>
    %cst_38 = arith.constant dense<0.000000e+00> : vector<16x16xf32>
    %71 = tpu.matmul %62, %70, %cst_38 {dimension_numbers = #tpu.dot_dimension_numbers<[1], [0], [0], [1], [0, 0, 1, 1], [], []>} : vector<16x48xbf16>, vector<48x16xbf16>, vector<16x16xf32> -> vector<16x16xf32>
    %72 = vector.broadcast %63 : vector<16x1xf32> to vector<16x16xf32>
    %73 = arith.addf %71, %72 : vector<16x16xf32>
    %c0_39 = arith.constant 0 : index
    %c0_40 = arith.constant 0 : index
    %74 = vector.load %arg10[%c0_39, %c0_40] : memref<16x1xf32, #tpu.memory_space<vmem>>, vector<16x1xf32>
    %c0_41 = arith.constant 0 : index
    %c0_42 = arith.constant 0 : index
    %75 = vector.load %arg11[%c0_41, %c0_42] : memref<16x1xf32, #tpu.memory_space<vmem>>, vector<16x1xf32>
    %cst_43 = arith.constant dense<0.000000e+00> : vector<16xf32>
    %76 = vector.multi_reduction <add>, %73, %cst_43 [1] : vector<16x16xf32> to vector<16xf32>
    %77 = vector.shape_cast %76 : vector<16xf32> to vector<16x1xf32>
    %78 = arith.mulf %73, %73 : vector<16x16xf32>
    %cst_44 = arith.constant dense<0.000000e+00> : vector<16xf32>
    %79 = vector.multi_reduction <add>, %78, %cst_44 [1] : vector<16x16xf32> to vector<16xf32>
    %80 = vector.shape_cast %79 : vector<16xf32> to vector<16x1xf32>
    %cst_45 = arith.constant dense<0.000000e+00> : vector<8x1xf32>
    %81 = tpu.matmul %2, %77, %cst_45 {dimension_numbers = #tpu.dot_dimension_numbers<[1], [0], [0], [1], [0, 0, 1, 1], [], []>} : vector<8x16xf32>, vector<16x1xf32>, vector<8x1xf32> -> vector<8x1xf32>
    %cst_46 = arith.constant 3.125000e-02 : f32
    %82 = vector.broadcast %cst_46 : f32 to vector<8x1xf32>
    %83 = arith.mulf %81, %82 : vector<8x1xf32>
    %cst_47 = arith.constant dense<0.000000e+00> : vector<8x1xf32>
    %84 = tpu.matmul %2, %80, %cst_47 {dimension_numbers = #tpu.dot_dimension_numbers<[1], [0], [0], [1], [0, 0, 1, 1], [], []>} : vector<8x16xf32>, vector<16x1xf32>, vector<8x1xf32> -> vector<8x1xf32>
    %cst_48 = arith.constant 3.125000e-02 : f32
    %85 = vector.broadcast %cst_48 : f32 to vector<8x1xf32>
    %86 = arith.mulf %84, %85 : vector<8x1xf32>
    %87 = arith.mulf %83, %83 : vector<8x1xf32>
    %88 = arith.subf %86, %87 : vector<8x1xf32>
    %cst_49 = arith.constant 0.000000e+00 : f32
    %89 = vector.broadcast %cst_49 : f32 to vector<8x1xf32>
    %90 = arith.maximumf %88, %89 : vector<8x1xf32>
    %cst_50 = arith.constant 9.99999974E-6 : f32
    %91 = vector.broadcast %cst_50 : f32 to vector<8x1xf32>
    %92 = arith.addf %90, %91 : vector<8x1xf32>
    %93 = math.rsqrt %92 : vector<8x1xf32>
    %cst_51 = arith.constant dense<0.000000e+00> : vector<16x1xf32>
    %94 = tpu.matmul %3, %83, %cst_51 {dimension_numbers = #tpu.dot_dimension_numbers<[1], [0], [0], [1], [0, 0, 1, 1], [], []>} : vector<16x8xf32>, vector<8x1xf32>, vector<16x1xf32> -> vector<16x1xf32>
    %cst_52 = arith.constant dense<0.000000e+00> : vector<16x1xf32>
    %95 = tpu.matmul %3, %93, %cst_52 {dimension_numbers = #tpu.dot_dimension_numbers<[1], [0], [0], [1], [0, 0, 1, 1], [], []>} : vector<16x8xf32>, vector<8x1xf32>, vector<16x1xf32> -> vector<16x1xf32>
    %96 = vector.broadcast %94 : vector<16x1xf32> to vector<16x16xf32>
    %97 = arith.subf %73, %96 : vector<16x16xf32>
    %98 = vector.broadcast %95 : vector<16x1xf32> to vector<16x16xf32>
    %99 = arith.mulf %97, %98 : vector<16x16xf32>
    %100 = vector.broadcast %74 : vector<16x1xf32> to vector<16x16xf32>
    %101 = arith.mulf %99, %100 : vector<16x16xf32>
    %102 = vector.broadcast %75 : vector<16x1xf32> to vector<16x16xf32>
    %103 = arith.addf %101, %102 : vector<16x16xf32>
    %104 = arith.negf %103 : vector<16x16xf32>
    %105 = math.exp %104 : vector<16x16xf32>
    %cst_53 = arith.constant 1.000000e+00 : f32
    %106 = vector.broadcast %cst_53 : f32 to vector<16x16xf32>
    %107 = arith.addf %106, %105 : vector<16x16xf32>
    %108 = arith.divf %106, %107 : vector<16x16xf32>
    %109 = arith.mulf %103, %108 : vector<16x16xf32>
    %c0_54 = arith.constant 0 : index
    %c0_55 = arith.constant 0 : index
    %110 = vector.load %arg12[%c0_54, %c0_55] : memref<16x4xbf16, #tpu.memory_space<vmem>>, vector<16x4xbf16>
    %111 = arith.truncf %1 : vector<4x16xf32> to vector<4x16xbf16>
    %cst_56 = arith.constant dense<0.000000e+00> : vector<16x16xf32>
    %112 = tpu.matmul %110, %111, %cst_56 {dimension_numbers = #tpu.dot_dimension_numbers<[1], [0], [0], [1], [0, 0, 1, 1], [], []>} : vector<16x4xbf16>, vector<4x16xbf16>, vector<16x16xf32> -> vector<16x16xf32>
    %c0_57 = arith.constant 0 : index
    %c0_58 = arith.constant 0 : index
    %113 = vector.load %arg13[%c0_57, %c0_58] : memref<16x1xf32, #tpu.memory_space<vmem>>, vector<16x1xf32>
    %114 = vector.broadcast %113 : vector<16x1xf32> to vector<16x16xf32>
    %115 = arith.addf %112, %114 : vector<16x16xf32>
    %116 = arith.addf %109, %115 : vector<16x16xf32>
    %c0_59 = arith.constant 0 : index
    %c0_60 = arith.constant 0 : index
    %c0_61 = arith.constant 0 : index
    %117 = vector.load %arg16[%c0_59, %c0_60, %c0_61] : memref<1x16x16xf32, #tpu.memory_space<vmem>>, vector<1x16x16xf32>
    %118 = vector.shape_cast %117 : vector<1x16x16xf32> to vector<16x16xf32>
    %119 = vector.shape_cast %116 : vector<16x16xf32> to vector<1x16x16xf32>
    tpu.vector_store %arg16[%c0_59, %c0_60, %c0_61], %119 {strides = array<i32>} : memref<1x16x16xf32, #tpu.memory_space<vmem>>, vector<1x16x16xf32>,
    return
  }
  func.func @transform_0(%arg0: i32) -> (i32, i32, i32) {
    %c0_i32 = arith.constant 0 : i32
    %c0_i32_0 = arith.constant 0 : i32
    %c0_i32_1 = arith.constant 0 : i32
    return %arg0, %c0_i32, %c0_i32_0 : i32, i32, i32
  }
  func.func @transform_1(%arg0: i32) -> (i32, i32, i32) {
    %c0_i32 = arith.constant 0 : i32
    %c0_i32_0 = arith.constant 0 : i32
    %c0_i32_1 = arith.constant 0 : i32
    return %arg0, %c0_i32, %c0_i32_0 : i32, i32, i32
  }
  func.func @transform_2(%arg0: i32) -> (i32, i32, i32) {
    %c0_i32 = arith.constant 0 : i32
    %c0_i32_0 = arith.constant 0 : i32
    %c0_i32_1 = arith.constant 0 : i32
    return %arg0, %c0_i32, %c0_i32_0 : i32, i32, i32
  }
  func.func @transform_3(%arg0: i32) -> (i32, i32) {
    %c0_i32 = arith.constant 0 : i32
    %c0_i32_0 = arith.constant 0 : i32
    %c0_i32_1 = arith.constant 0 : i32
    return %c0_i32, %c0_i32_0 : i32, i32
  }
  func.func @transform_4(%arg0: i32) -> (i32, i32) {
    %c0_i32 = arith.constant 0 : i32
    %c0_i32_0 = arith.constant 0 : i32
    %c0_i32_1 = arith.constant 0 : i32
    return %c0_i32, %c0_i32_0 : i32, i32
  }
  func.func @transform_5(%arg0: i32) -> (i32, i32) {
    %c0_i32 = arith.constant 0 : i32
    %c0_i32_0 = arith.constant 0 : i32
    %c0_i32_1 = arith.constant 0 : i32
    return %c0_i32, %c0_i32_0 : i32, i32
  }
  func.func @transform_6(%arg0: i32) -> (i32, i32) {
    %c0_i32 = arith.constant 0 : i32
    %c0_i32_0 = arith.constant 0 : i32
    %c0_i32_1 = arith.constant 0 : i32
    return %c0_i32, %c0_i32_0 : i32, i32
  }
  func.func @transform_7(%arg0: i32) -> (i32, i32) {
    %c0_i32 = arith.constant 0 : i32
    %c0_i32_0 = arith.constant 0 : i32
    %c0_i32_1 = arith.constant 0 : i32
    return %c0_i32, %c0_i32_0 : i32, i32
  }
  func.func @transform_8(%arg0: i32) -> (i32, i32) {
    %c0_i32 = arith.constant 0 : i32
    %c0_i32_0 = arith.constant 0 : i32
    %c0_i32_1 = arith.constant 0 : i32
    return %c0_i32, %c0_i32_0 : i32, i32
  }
  func.func @transform_9(%arg0: i32) -> (i32, i32) {
    %c0_i32 = arith.constant 0 : i32
    %c0_i32_0 = arith.constant 0 : i32
    %c0_i32_1 = arith.constant 0 : i32
    return %c0_i32, %c0_i32_0 : i32, i32
  }
  func.func @transform_10(%arg0: i32) -> (i32, i32) {
    %c0_i32 = arith.constant 0 : i32
    %c0_i32_0 = arith.constant 0 : i32
    %c0_i32_1 = arith.constant 0 : i32
    return %c0_i32, %c0_i32_0 : i32, i32
  }
  func.func @transform_11(%arg0: i32) -> (i32, i32) {
    %c0_i32 = arith.constant 0 : i32
    %c0_i32_0 = arith.constant 0 : i32
    %c0_i32_1 = arith.constant 0 : i32
    return %c0_i32, %c0_i32_0 : i32, i32
  }
  func.func @transform_12(%arg0: i32) -> (i32, i32) {
    %c0_i32 = arith.constant 0 : i32
    %c0_i32_0 = arith.constant 0 : i32
    %c0_i32_1 = arith.constant 0 : i32
    return %c0_i32, %c0_i32_0 : i32, i32
  }
  func.func @transform_13(%arg0: i32) -> (i32, i32) {
    %c0_i32 = arith.constant 0 : i32
    %c0_i32_0 = arith.constant 0 : i32
    %c0_i32_1 = arith.constant 0 : i32
    return %c0_i32, %c0_i32_0 : i32, i32
  }
  func.func @transform_14(%arg0: i32) -> (i32, i32) {
    %c0_i32 = arith.constant 0 : i32
    %c0_i32_0 = arith.constant 0 : i32
    %c0_i32_1 = arith.constant 0 : i32
    return %c0_i32, %c0_i32_0 : i32, i32
  }
  func.func @transform_15(%arg0: i32) -> (i32, i32, i32) {
    %c0_i32 = arith.constant 0 : i32
    %c0_i32_0 = arith.constant 0 : i32
    %c0_i32_1 = arith.constant 0 : i32
    return %arg0, %c0_i32, %c0_i32_0 : i32, i32, i32
  }
}

</mosaic_0001>

<llo_original>
// kernel: tpu_custom_call.1
$region0: #{tpu_custom_call.1}
  #allocation0 [shape = 'u32[]', space=smem, size = 0x4, offset = 0x4, fixed_abs, tag = 'smem constant byte address 0x4 - core index']
  #allocation1 [shape = 'u32[144,128]{1,0:T(1,128)}', space=vmem, size = 0x12000, scoped, tag = 'internal scratch']
  %s0 = inlined_call_operand.vmem [shape: f32[2,4,16], index: 0, kind: input, shape index: {}]
  %s1 = inlined_call_operand.vmem [shape: f32[2,16,1], index: 1, kind: input, shape index: {}]
  %s2 = inlined_call_operand.vmem [shape: f32[2,16,1], index: 2, kind: input, shape index: {}]
  %s3 = inlined_call_operand.vmem [shape: bf16[16,12], index: 3, kind: input, shape index: {}]
  %s4 = inlined_call_operand.vmem [shape: f32[16,1], index: 4, kind: input, shape index: {}]
  %s5 = inlined_call_operand.vmem [shape: f32[16,1], index: 5, kind: input, shape index: {}]
  %s6 = inlined_call_operand.vmem [shape: f32[16,1], index: 6, kind: input, shape index: {}]
  %s7 = inlined_call_operand.vmem [shape: bf16[16,48], index: 7, kind: input, shape index: {}]
  %s8 = inlined_call_operand.vmem [shape: f32[16,1], index: 8, kind: input, shape index: {}]
  %s9 = inlined_call_operand.vmem [shape: f32[16,1], index: 9, kind: input, shape index: {}]
  %s10 = inlined_call_operand.vmem [shape: f32[16,1], index: 10, kind: input, shape index: {}]
  %s11 = inlined_call_operand.vmem [shape: bf16[16,4], index: 11, kind: input, shape index: {}]
  %s12 = inlined_call_operand.vmem [shape: f32[16,1], index: 12, kind: input, shape index: {}]
  %s13 = inlined_call_operand.vmem [shape: f32[8,16], index: 13, kind: input, shape index: {}]
  %s14 = inlined_call_operand.vmem [shape: f32[16,8], index: 14, kind: input, shape index: {}]
  %s15 = inlined_call_operand.hbm [shape: f32[2,16,16], index: 15, kind: output, shape index: {}]
  %s16 = sld [smem:[#allocation0]]
  $region93: #{tpu_custom_call.1} parent=0
    _
  %s18 = ssub.s32 1, %s16
  %s19 = scalar_select 0, %s18, %s16
  $region1: #{tpu_custom_call.1} parent=0
    #allocation2 [shape = 'u8[16384]{0}', space=vmem, size = 0x4000, scoped, tag = 'output window, operand 0']
    #allocation3 [shape = 's32[2]{0}', space=sflag, size = 0x8, scoped, tag = 'scoped memory for tpu_custom_call.1']
    %20 = vsyncpa [#allocation3], 0
    %s21 = scalar_lea.sflag [#allocation3], 1
    %22 = vsyncpa %s21, 0
    loop: start=0, step=1, limit=4
    $region2: #{tpu_custom_call.1} parent=1 // loop_pre_header
      _
    $region3: #{tpu_custom_call.1} parent=1 // loop_header
      %s24 = sphi 0, %s28
      %p25 = scmp.ge.s32.totalorder %s24, 4
      %s34 = sphi 0, %s36
      %s37 = sphi 0, %s34
      %s38 = sphi 0, %s37
      %s54 = sphi 0, %s38
      %s60 = sphi 0, %s62
      %s63 = sphi 0, %s60
      %s64 = sphi 0, %s63
      %s80 = sphi 0, %s64
      %s86 = sphi 0, %s88
      %s89 = sphi 0, %s86
      %s90 = sphi 0, %s89
      %s106 = sphi 0, %s90
      %s110 = sphi 0, %s110
      %s112 = sphi 0, %s110
      %s113 = sphi 0, %s112
      %s127 = sphi 0, %s113
      %s131 = sphi 0, %s131
      %s133 = sphi 0, %s131
      %s134 = sphi 0, %s133
      %s148 = sphi 0, %s134
      %s152 = sphi 0, %s152
      %s154 = sphi 0, %s152
      %s155 = sphi 0, %s154
      %s169 = sphi 0, %s155
      %s173 = sphi 0, %s173
      %s175 = sphi 0, %s173
      %s176 = sphi 0, %s175
      %s190 = sphi 0, %s176
      %s194 = sphi 0, %s194
      %s196 = sphi 0, %s194
      %s197 = sphi 0, %s196
      %s211 = sphi 0, %s197
      %s215 = sphi 0, %s215
      %s217 = sphi 0, %s215
      %s218 = sphi 0, %s217
      %s232 = sphi 0, %s218
      %s236 = sphi 0, %s236
      %s238 = sphi 0, %s236
      %s239 = sphi 0, %s238
      %s253 = sphi 0, %s239
      %s257 = sphi 0, %s257
      %s259 = sphi 0, %s257
      %s260 = sphi 0, %s259
      %s274 = sphi 0, %s260
      %s278 = sphi 0, %s278
      %s280 = sphi 0, %s278
      %s281 = sphi 0, %s280
      %s295 = sphi 0, %s281
      %s299 = sphi 0, %s299
      %s301 = sphi 0, %s299
      %s302 = sphi 0, %s301
      %s316 = sphi 0, %s302
      %s320 = sphi 0, %s320
      %s322 = sphi 0, %s320
      %s323 = sphi 0, %s322
      %s337 = sphi 0, %s323
      %s341 = sphi 0, %s341
      %s343 = sphi 0, %s341
      %s344 = sphi 0, %s343
      %s358 = sphi 0, %s344
      %s364 = sphi 0, %s366
      %s367 = sphi 0, %s364
      %s368 = sphi 0, %s367
      %s384 = sphi 0, %s368
    $region4: #{tpu_custom_call.1} parent=1 // loop_header_branch
      %27 = sbr.rel (%p25) target = $region8
    $region5: #{tpu_custom_call.1} parent=1 // loop_body
      %s29 = ssub.s32 %s24, 1
      %s30 = ssub.s32 %s24, 2
      %s31 = sadd.s32 %s24, 1
      %s32 = ssub.s32 %s24, %s31
      %p33 = scmp.eq.s32.totalorder %s32, 0
      %s35 = sadd.s32 %s34, 1
      %s36 = scalar_select %p33, %s34, %s35
      %p39 = pneg %p33
      %p40 = scmp.eq.s32.totalorder %s24, 1
      %p41 = por %p39, %p40
      %p42 = scmp.ne.s32.totalorder %s34, %s37
      %p43 = scmp.eq.s32.totalorder %s24, 0
      %p44 = por %p42, %p43
      %p45 = scmp.ne.s32.totalorder %s34, %s37
      %p46 = scmp.eq.s32.totalorder %s29, 1
      %p47 = por %p45, %p46
      %p48 = scmp.ne.s32.totalorder %s37, %s38
      %p49 = scmp.eq.s32.totalorder %s29, 0
      %p50 = por %p48, %p49
      %p51 = scmp.ne.s32.totalorder %s37, %s38
      %p52 = scmp.eq.s32.totalorder %s30, 1
      %p53 = por %p51, %p52
      %p55 = scmp.ne.s32.totalorder %s38, %s54
      %p56 = scmp.eq.s32.totalorder %s30, 0
      %p57 = por %p55, %p56
      %s58 = ssub.s32 %s24, %s31
      %p59 = scmp.eq.s32.totalorder %s58, 0
      %s61 = sadd.s32 %s60, 1
      %s62 = scalar_select %p59, %s60, %s61
      %p65 = pneg %p59
      %p66 = scmp.eq.s32.totalorder %s24, 1
      %p67 = por %p65, %p66
      %p68 = scmp.ne.s32.totalorder %s60, %s63
      %p69 = scmp.eq.s32.totalorder %s24, 0
      %p70 = por %p68, %p69
      %p71 = scmp.ne.s32.totalorder %s60, %s63
      %p72 = scmp.eq.s32.totalorder %s29, 1
      %p73 = por %p71, %p72
      %p74 = scmp.ne.s32.totalorder %s63, %s64
      %p75 = scmp.eq.s32.totalorder %s29, 0
      %p76 = por %p74, %p75
      %p77 = scmp.ne.s32.totalorder %s63, %s64
      %p78 = scmp.eq.s32.totalorder %s30, 1
      %p79 = por %p77, %p78
      %p81 = scmp.ne.s32.totalorder %s64, %s80
      %p82 = scmp.eq.s32.totalorder %s30, 0
      %p83 = por %p81, %p82
      %s84 = ssub.s32 %s24, %s31
      %p85 = scmp.eq.s32.totalorder %s84, 0
      %s87 = sadd.s32 %s86, 1
      %s88 = scalar_select %p85, %s86, %s87
      %p91 = pneg %p85
      %p92 = scmp.eq.s32.totalorder %s24, 1
      %p93 = por %p91, %p92
      %p94 = scmp.ne.s32.totalorder %s86, %s89
      %p95 = scmp.eq.s32.totalorder %s24, 0
      %p96 = por %p94, %p95
      %p97 = scmp.ne.s32.totalorder %s86, %s89
      %p98 = scmp.eq.s32.totalorder %s29, 1
      %p99 = por %p97, %p98
      %p100 = scmp.ne.s32.totalorder %s89, %s90
      %p101 = scmp.eq.s32.totalorder %s29, 0
      %p102 = por %p100, %p101
      %p103 = scmp.ne.s32.totalorder %s89, %s90
      %p104 = scmp.eq.s32.totalorder %s30, 1
      %p105 = por %p103, %p104
      %p107 = scmp.ne.s32.totalorder %s90, %s106
      %p108 = scmp.eq.s32.totalorder %s30, 0
      %p109 = por %p107, %p108
      %s111 = sadd.s32 %s110, 1
      %p114 = scmp.eq.s32.totalorder %s24, 1
      %p115 = scmp.ne.s32.totalorder %s110, %s112
      %p116 = scmp.eq.s32.totalorder %s24, 0
      %p117 = por %p115, %p116
      %p118 = scmp.ne.s32.totalorder %s110, %s112
      %p119 = scmp.eq.s32.totalorder %s29, 1
      %p120 = por %p118, %p119
      %p121 = scmp.ne.s32.totalorder %s112, %s113
      %p122 = scmp.eq.s32.totalorder %s29, 0
      %p123 = por %p121, %p122
      %p124 = scmp.ne.s32.totalorder %s112, %s113
      %p125 = scmp.eq.s32.totalorder %s30, 1
      %p126 = por %p124, %p125
      %p128 = scmp.ne.s32.totalorder %s113, %s127
      %p129 = scmp.eq.s32.totalorder %s30, 0
      %p130 = por %p128, %p129
      %s132 = sadd.s32 %s131, 1
      %p135 = scmp.eq.s32.totalorder %s24, 1
      %p136 = scmp.ne.s32.totalorder %s131, %s133
      %p137 = scmp.eq.s32.totalorder %s24, 0
      %p138 = por %p136, %p137
      %p139 = scmp.ne.s32.totalorder %s131, %s133
      %p140 = scmp.eq.s32.totalorder %s29, 1
      %p141 = por %p139, %p140
      %p142 = scmp.ne.s32.totalorder %s133, %s134
      %p143 = scmp.eq.s32.totalorder %s29, 0
      %p144 = por %p142, %p143
      %p145 = scmp.ne.s32.totalorder %s133, %s134
      %p146 = scmp.eq.s32.totalorder %s30, 1
      %p147 = por %p145, %p146
      %p149 = scmp.ne.s32.totalorder %s134, %s148
      %p150 = scmp.eq.s32.totalorder %s30, 0
      %p151 = por %p149, %p150
      %s153 = sadd.s32 %s152, 1
      %p156 = scmp.eq.s32.totalorder %s24, 1
      %p157 = scmp.ne.s32.totalorder %s152, %s154
      %p158 = scmp.eq.s32.totalorder %s24, 0
      %p159 = por %p157, %p158
      %p160 = scmp.ne.s32.totalorder %s152, %s154
      %p161 = scmp.eq.s32.totalorder %s29, 1
      %p162 = por %p160, %p161
      %p163 = scmp.ne.s32.totalorder %s154, %s155
      %p164 = scmp.eq.s32.totalorder %s29, 0
      %p165 = por %p163, %p164
      %p166 = scmp.ne.s32.totalorder %s154, %s155
      %p167 = scmp.eq.s32.totalorder %s30, 1
      %p168 = por %p166, %p167
      %p170 = scmp.ne.s32.totalorder %s155, %s169
      %p171 = scmp.eq.s32.totalorder %s30, 0
      %p172 = por %p170, %p171
      %s174 = sadd.s32 %s173, 1
      %p177 = scmp.eq.s32.totalorder %s24, 1
      %p178 = scmp.ne.s32.totalorder %s173, %s175
      %p179 = scmp.eq.s32.totalorder %s24, 0
      %p180 = por %p178, %p179
      %p181 = scmp.ne.s32.totalorder %s173, %s175
      %p182 = scmp.eq.s32.totalorder %s29, 1
      %p183 = por %p181, %p182
      %p184 = scmp.ne.s32.totalorder %s175, %s176
      %p185 = scmp.eq.s32.totalorder %s29, 0
      %p186 = por %p184, %p185
      %p187 = scmp.ne.s32.totalorder %s175, %s176
      %p188 = scmp.eq.s32.totalorder %s30, 1
      %p189 = por %p187, %p188
      %p191 = scmp.ne.s32.totalorder %s176, %s190
      %p192 = scmp.eq.s32.totalorder %s30, 0
      %p193 = por %p191, %p192
      %s195 = sadd.s32 %s194, 1
      %p198 = scmp.eq.s32.totalorder %s24, 1
      %p199 = scmp.ne.s32.totalorder %s194, %s196
      %p200 = scmp.eq.s32.totalorder %s24, 0
      %p201 = por %p199, %p200
      %p202 = scmp.ne.s32.totalorder %s194, %s196
      %p203 = scmp.eq.s32.totalorder %s29, 1
      %p204 = por %p202, %p203
      %p205 = scmp.ne.s32.totalorder %s196, %s197
      %p206 = scmp.eq.s32.totalorder %s29, 0
      %p207 = por %p205, %p206
      %p208 = scmp.ne.s32.totalorder %s196, %s197
      %p209 = scmp.eq.s32.totalorder %s30, 1
      %p210 = por %p208, %p209
      %p212 = scmp.ne.s32.totalorder %s197, %s211
      %p213 = scmp.eq.s32.totalorder %s30, 0
      %p214 = por %p212, %p213
      %s216 = sadd.s32 %s215, 1
      %p219 = scmp.eq.s32.totalorder %s24, 1
      %p220 = scmp.ne.s32.totalorder %s215, %s217
      %p221 = scmp.eq.s32.totalorder %s24, 0
      %p222 = por %p220, %p221
      %p223 = scmp.ne.s32.totalorder %s215, %s217
      %p224 = scmp.eq.s32.totalorder %s29, 1
      %p225 = por %p223, %p224
      %p226 = scmp.ne.s32.totalorder %s217, %s218
      %p227 = scmp.eq.s32.totalorder %s29, 0
      %p228 = por %p226, %p227
      %p229 = scmp.ne.s32.totalorder %s217, %s218
      %p230 = scmp.eq.s32.totalorder %s30, 1
      %p231 = por %p229, %p230
      %p233 = scmp.ne.s32.totalorder %s218, %s232
      %p234 = scmp.eq.s32.totalorder %s30, 0
      %p235 = por %p233, %p234
      %s237 = sadd.s32 %s236, 1
      %p240 = scmp.eq.s32.totalorder %s24, 1
      %p241 = scmp.ne.s32.totalorder %s236, %s238
      %p242 = scmp.eq.s32.totalorder %s24, 0
      %p243 = por %p241, %p242
      %p244 = scmp.ne.s32.totalorder %s236, %s238
      %p245 = scmp.eq.s32.totalorder %s29, 1
      %p246 = por %p244, %p245
      %p247 = scmp.ne.s32.totalorder %s238, %s239
      %p248 = scmp.eq.s32.totalorder %s29, 0
      %p249 = por %p247, %p248
      %p250 = scmp.ne.s32.totalorder %s238, %s239
      %p251 = scmp.eq.s32.totalorder %s30, 1
      %p252 = por %p250, %p251
      %p254 = scmp.ne.s32.totalorder %s239, %s253
      %p255 = scmp.eq.s32.totalorder %s30, 0
      %p256 = por %p254, %p255
      %s258 = sadd.s32 %s257, 1
      %p261 = scmp.eq.s32.totalorder %s24, 1
      %p262 = scmp.ne.s32.totalorder %s257, %s259
      %p263 = scmp.eq.s32.totalorder %s24, 0
      %p264 = por %p262, %p263
      %p265 = scmp.ne.s32.totalorder %s257, %s259
      %p266 = scmp.eq.s32.totalorder %s29, 1
      %p267 = por %p265, %p266
      %p268 = scmp.ne.s32.totalorder %s259, %s260
      %p269 = scmp.eq.s32.totalorder %s29, 0
      %p270 = por %p268, %p269
      %p271 = scmp.ne.s32.totalorder %s259, %s260
      %p272 = scmp.eq.s32.totalorder %s30, 1
      %p273 = por %p271, %p272
      %p275 = scmp.ne.s32.totalorder %s260, %s274
      %p276 = scmp.eq.s32.totalorder %s30, 0
      %p277 = por %p275, %p276
      %s279 = sadd.s32 %s278, 1
      %p282 = scmp.eq.s32.totalorder %s24, 1
      %p283 = scmp.ne.s32.totalorder %s278, %s280
      %p284 = scmp.eq.s32.totalorder %s24, 0
      %p285 = por %p283, %p284
      %p286 = scmp.ne.s32.totalorder %s278, %s280
      %p287 = scmp.eq.s32.totalorder %s29, 1
      %p288 = por %p286, %p287
      %p289 = scmp.ne.s32.totalorder %s280, %s281
      %p290 = scmp.eq.s32.totalorder %s29, 0
      %p291 = por %p289, %p290
      %p292 = scmp.ne.s32.totalorder %s280, %s281
      %p293 = scmp.eq.s32.totalorder %s30, 1
      %p294 = por %p292, %p293
      %p296 = scmp.ne.s32.totalorder %s281, %s295
      %p297 = scmp.eq.s32.totalorder %s30, 0
      %p298 = por %p296, %p297
      %s300 = sadd.s32 %s299, 1
      %p303 = scmp.eq.s32.totalorder %s24, 1
      %p304 = scmp.ne.s32.totalorder %s299, %s301
      %p305 = scmp.eq.s32.totalorder %s24, 0
      %p306 = por %p304, %p305
      %p307 = scmp.ne.s32.totalorder %s299, %s301
      %p308 = scmp.eq.s32.totalorder %s29, 1
      %p309 = por %p307, %p308
      %p310 = scmp.ne.s32.totalorder %s301, %s302
      %p311 = scmp.eq.s32.totalorder %s29, 0
      %p312 = por %p310, %p311
      %p313 = scmp.ne.s32.totalorder %s301, %s302
      %p314 = scmp.eq.s32.totalorder %s30, 1
      %p315 = por %p313, %p314
      %p317 = scmp.ne.s32.totalorder %s302, %s316
      %p318 = scmp.eq.s32.totalorder %s30, 0
      %p319 = por %p317, %p318
      %s321 = sadd.s32 %s320, 1
      %p324 = scmp.eq.s32.totalorder %s24, 1
      %p325 = scmp.ne.s32.totalorder %s320, %s322
      %p326 = scmp.eq.s32.totalorder %s24, 0
      %p327 = por %p325, %p326
      %p328 = scmp.ne.s32.totalorder %s320, %s322
      %p329 = scmp.eq.s32.totalorder %s29, 1
      %p330 = por %p328, %p329
      %p331 = scmp.ne.s32.totalorder %s322, %s323
      %p332 = scmp.eq.s32.totalorder %s29, 0
      %p333 = por %p331, %p332
      %p334 = scmp.ne.s32.totalorder %s322, %s323
      %p335 = scmp.eq.s32.totalorder %s30, 1
      %p336 = por %p334, %p335
      %p338 = scmp.ne.s32.totalorder %s323, %s337
      %p339 = scmp.eq.s32.totalorder %s30, 0
      %p340 = por %p338, %p339
      %s342 = sadd.s32 %s341, 1
      %p345 = scmp.eq.s32.totalorder %s24, 1
      %p346 = scmp.ne.s32.totalorder %s341, %s343
      %p347 = scmp.eq.s32.totalorder %s24, 0
      %p348 = por %p346, %p347
      %p349 = scmp.ne.s32.totalorder %s341, %s343
      %p350 = scmp.eq.s32.totalorder %s29, 1
      %p351 = por %p349, %p350
      %p352 = scmp.ne.s32.totalorder %s343, %s344
      %p353 = scmp.eq.s32.totalorder %s29, 0
      %p354 = por %p352, %p353
      %p355 = scmp.ne.s32.totalorder %s343, %s344
      %p356 = scmp.eq.s32.totalorder %s30, 1
      %p357 = por %p355, %p356
      %p359 = scmp.ne.s32.totalorder %s344, %s358
      %p360 = scmp.eq.s32.totalorder %s30, 0
      %p361 = por %p359, %p360
      %s362 = ssub.s32 %s24, %s31
      %p363 = scmp.eq.s32.totalorder %s362, 0
      %s365 = sadd.s32 %s364, 1
      %s366 = scalar_select %p363, %s364, %s365
      %p369 = pneg %p363
      %p370 = scmp.eq.s32.totalorder %s24, 1
      %p371 = por %p369, %p370
      %p372 = scmp.ne.s32.totalorder %s364, %s367
      %p373 = scmp.eq.s32.totalorder %s24, 0
      %p374 = por %p372, %p373
      %p375 = scmp.ne.s32.totalorder %s364, %s367
      %p376 = scmp.eq.s32.totalorder %s29, 1
      %p377 = por %p375, %p376
      %p378 = scmp.ne.s32.totalorder %s367, %s368
      %p379 = scmp.eq.s32.totalorder %s29, 0
      %p380 = por %p378, %p379
      %p381 = scmp.ne.s32.totalorder %s367, %s368
      %p382 = scmp.eq.s32.totalorder %s30, 1
      %p383 = por %p381, %p382
      %p385 = scmp.ne.s32.totalorder %s368, %s384
      %p386 = scmp.eq.s32.totalorder %s30, 0
      %p387 = por %p385, %p386
      %p388 = scmp.le.s32.totalorder 1, %s24
      %p389 = scmp.lt.s32.totalorder %s24, 3
      %p390 = pnand %p388, %p389
      %p391 = pneg %p390
      // Predicated region
      $region9: #{tpu_custom_call.1} parent=5 // pred_check
        _
      $region10: #{tpu_custom_call.1} parent=5 // pred_check_branch
        %393 = sbr.rel (%p390) target = $region12
      $region11: #{tpu_custom_call.1} parent=5 // pred_region
        %s394 = ssub.s32 %s24, 1
        // Predicated region
        $region13: #{tpu_custom_call.1} parent=11 // pred_check
          %p395 = pneg %p123
        $region14: #{tpu_custom_call.1} parent=11 // pred_check_branch
          %397 = sbr.rel (%p395) target = $region16
        $region15: #{tpu_custom_call.1} parent=11 // pred_region
          _
        $region16: #{tpu_custom_call.1} parent=11 // pred_fallthru
          _
        // Predicated region
        $region17: #{tpu_custom_call.1} parent=11 // pred_check
          %p398 = pneg %p144
        $region18: #{tpu_custom_call.1} parent=11 // pred_check_branch
          %400 = sbr.rel (%p398) target = $region20
        $region19: #{tpu_custom_call.1} parent=11 // pred_region
          _
        $region20: #{tpu_custom_call.1} parent=11 // pred_fallthru
          _
        // Predicated region
        $region21: #{tpu_custom_call.1} parent=11 // pred_check
          %p401 = pneg %p165
        $region22: #{tpu_custom_call.1} parent=11 // pred_check_branch
          %403 = sbr.rel (%p401) target = $region24
        $region23: #{tpu_custom_call.1} parent=11 // pred_region
          _
        $region24: #{tpu_custom_call.1} parent=11 // pred_fallthru
          _
        // Predicated region
        $region25: #{tpu_custom_call.1} parent=11 // pred_check
          %p404 = pneg %p186
        $region26: #{tpu_custom_call.1} parent=11 // pred_check_branch
          %406 = sbr.rel (%p404) target = $region28
        $region27: #{tpu_custom_call.1} parent=11 // pred_region
          _
        $region28: #{tpu_custom_call.1} parent=11 // pred_fallthru
          _
        // Predicated region
        $region29: #{tpu_custom_call.1} parent=11 // pred_check
          %p407 = pneg %p207
        $region30: #{tpu_custom_call.1} parent=11 // pred_check_branch
          %409 = sbr.rel (%p407) target = $region32
        $region31: #{tpu_custom_call.1} parent=11 // pred_region
          _
        $region32: #{tpu_custom_call.1} parent=11 // pred_fallthru
          _
        // Predicated region
        $region33: #{tpu_custom_call.1} parent=11 // pred_check
          %p410 = pneg %p228
        $region34: #{tpu_custom_call.1} parent=11 // pred_check_branch
          %412 = sbr.rel (%p410) target = $region36
        $region35: #{tpu_custom_call.1} parent=11 // pred_region
          _
        $region36: #{tpu_custom_call.1} parent=11 // pred_fallthru
          _
        // Predicated region
        $region37: #{tpu_custom_call.1} parent=11 // pred_check
          %p413 = pneg %p249
        $region38: #{tpu_custom_call.1} parent=11 // pred_check_branch
          %415 = sbr.rel (%p413) target = $region40
        $region39: #{tpu_custom_call.1} parent=11 // pred_region
          _
        $region40: #{tpu_custom_call.1} parent=11 // pred_fallthru
          _
        // Predicated region
        $region41: #{tpu_custom_call.1} parent=11 // pred_check
          %p416 = pneg %p270
        $region42: #{tpu_custom_call.1} parent=11 // pred_check_branch
          %418 = sbr.rel (%p416) target = $region44
        $region43: #{tpu_custom_call.1} parent=11 // pred_region
          _
        $region44: #{tpu_custom_call.1} parent=11 // pred_fallthru
          _
        // Predicated region
        $region45: #{tpu_custom_call.1} parent=11 // pred_check
          %p419 = pneg %p291
        $region46: #{tpu_custom_call.1} parent=11 // pred_check_branch
          %421 = sbr.rel (%p419) target = $region48
        $region47: #{tpu_custom_call.1} parent=11 // pred_region
          _
        $region48: #{tpu_custom_call.1} parent=11 // pred_fallthru
          _
        // Predicated region
        $region49: #{tpu_custom_call.1} parent=11 // pred_check
          %p422 = pneg %p312
        $region50: #{tpu_custom_call.1} parent=11 // pred_check_branch
          %424 = sbr.rel (%p422) target = $region52
        $region51: #{tpu_custom_call.1} parent=11 // pred_region
          _
        $region52: #{tpu_custom_call.1} parent=11 // pred_fallthru
          _
        // Predicated region
        $region53: #{tpu_custom_call.1} parent=11 // pred_check
          %p425 = pneg %p333
        $region54: #{tpu_custom_call.1} parent=11 // pred_check_branch
          %427 = sbr.rel (%p425) target = $region56
        $region55: #{tpu_custom_call.1} parent=11 // pred_region
          _
        $region56: #{tpu_custom_call.1} parent=11 // pred_fallthru
          _
        // Predicated region
        $region57: #{tpu_custom_call.1} parent=11 // pred_check
          %p428 = pneg %p354
        $region58: #{tpu_custom_call.1} parent=11 // pred_check_branch
          %430 = sbr.rel (%p428) target = $region60
        $region59: #{tpu_custom_call.1} parent=11 // pred_region
          _
        $region60: #{tpu_custom_call.1} parent=11 // pred_fallthru
          _
      $region12: #{tpu_custom_call.1} parent=5 // pred_fallthru
        _
      %p431 = scmp.lt.s32.totalorder %s24, 2
      // Predicated region
      $region61: #{tpu_custom_call.1} parent=5 // pred_check
        %p432 = pneg %p431
      $region62: #{tpu_custom_call.1} parent=5 // pred_check_branch
        %434 = sbr.rel (%p432) target = $region64
      $region63: #{tpu_custom_call.1} parent=5 // pred_region
        // Predicated region
        $region65: #{tpu_custom_call.1} parent=63 // pred_check
          %p435 = pneg %p44
        $region66: #{tpu_custom_call.1} parent=63 // pred_check_branch
          %437 = sbr.rel (%p435) target = $region68
        $region67: #{tpu_custom_call.1} parent=63 // pred_region
          %p438 = scmp.lt.s32.totalorder %s24, 1
          %s439 = scalar_select %p438, %s24, 1
          %s440 = smul.addr %s439, 4
          %s441 = scalar_lea.vmem %s0, %s440
        $region68: #{tpu_custom_call.1} parent=63 // pred_fallthru
          _
        // Predicated region
        $region69: #{tpu_custom_call.1} parent=63 // pred_check
          %p442 = pneg %p70
        $region70: #{tpu_custom_call.1} parent=63 // pred_check_branch
          %444 = sbr.rel (%p442) target = $region72
        $region71: #{tpu_custom_call.1} parent=63 // pred_region
          %p445 = scmp.lt.s32.totalorder %s24, 1
          %s446 = scalar_select %p445, %s24, 1
          %s447 = smul.addr %s446, 2
          %s448 = smul.addr %s447, 8
          %s449 = scalar_lea.vmem %s1, %s448
        $region72: #{tpu_custom_call.1} parent=63 // pred_fallthru
          _
        // Predicated region
        $region73: #{tpu_custom_call.1} parent=63 // pred_check
          %p450 = pneg %p96
        $region74: #{tpu_custom_call.1} parent=63 // pred_check_branch
          %452 = sbr.rel (%p450) target = $region76
        $region75: #{tpu_custom_call.1} parent=63 // pred_region
          %p453 = scmp.lt.s32.totalorder %s24, 1
          %s454 = scalar_select %p453, %s24, 1
          %s455 = smul.addr %s454, 2
          %s456 = smul.addr %s455, 8
          %s457 = scalar_lea.vmem %s2, %s456
        $region76: #{tpu_custom_call.1} parent=63 // pred_fallthru
          _
      $region64: #{tpu_custom_call.1} parent=5 // pred_fallthru
        _
      %p458 = scmp.le.s32.totalorder 1, %s24
      %p459 = scmp.lt.s32.totalorder %s24, 3
      %p460 = pnand %p458, %p459
      %p461 = pneg %p460
      // Predicated region
      $region77: #{tpu_custom_call.1} parent=5 // pred_check
        _
      $region78: #{tpu_custom_call.1} parent=5 // pred_check_branch
        %463 = sbr.rel (%p460) target = $region80
      $region79: #{tpu_custom_call.1} parent=5 // pred_region
        %s464 = ssub.s32 %s24, 1
        %p465 = scmp.lt.s32.totalorder %s29, 1
        %s466 = scalar_select %p465, %s29, 1
        %s467 = smul.addr %s466, 4
        %s468 = scalar_lea.vmem %s0, %s467
        %p469 = pneg %p50
        %p470 = pneg %p47
        %p471 = scmp.lt.s32.totalorder %s29, 1
        %s472 = scalar_select %p471, %s29, 1
        %s473 = smul.addr %s472, 2
        %s474 = smul.addr %s473, 8
        %s475 = scalar_lea.vmem %s1, %s474
        %p476 = pneg %p76
        %p477 = pneg %p73
        %p478 = scmp.lt.s32.totalorder %s29, 1
        %s479 = scalar_select %p478, %s29, 1
        %s480 = smul.addr %s479, 2
        %s481 = smul.addr %s480, 8
        %s482 = scalar_lea.vmem %s2, %s481
        %p483 = pneg %p102
        %p484 = pneg %p99
        %p485 = pneg %p123
        %p486 = pneg %p120
        %p487 = pneg %p144
        %p488 = pneg %p141
        %p489 = pneg %p165
        %p490 = pneg %p162
        %p491 = pneg %p186
        %p492 = pneg %p183
        %p493 = pneg %p207
        %p494 = pneg %p204
        %p495 = pneg %p228
        %p496 = pneg %p225
        %p497 = pneg %p249
        %p498 = pneg %p246
        %p499 = pneg %p270
        %p500 = pneg %p267
        %p501 = pneg %p291
        %p502 = pneg %p288
        %p503 = pneg %p312
        %p504 = pneg %p309
        %p505 = pneg %p333
        %p506 = pneg %p330
        %p507 = pneg %p354
        %p508 = pneg %p351
        %p509 = pneg %p380
        %p510 = pneg %p377
        %s511 = sand.u32 %s367, 1
        %s512 = scalar_lea.sflag [#allocation3], %s511
        %s513 = sand.u32 %s367, 1
        %s514 = smul.addr %s513, 16
        %s515 = scalar_lea.vmem [#allocation2], %s514
        %p516 = scmp.lt.s32.totalorder %s29, 1
        %s517 = scalar_select %p516, %s29, 1
        %s518 = smul.addr %s517, 4
        %s519 = scalar_lea.vmem %s0, %s518
        %p520 = scmp.lt.s32.totalorder %s29, 1
        %s521 = scalar_select %p520, %s29, 1
        %s522 = smul.addr %s521, 2
        %s523 = smul.addr %s522, 8
        %s524 = scalar_lea.vmem %s1, %s523
        %p525 = scmp.lt.s32.totalorder %s29, 1
        %s526 = scalar_select %p525, %s29, 1
        %s527 = smul.addr %s526, 2
        %s528 = smul.addr %s527, 8
        %s529 = scalar_lea.vmem %s2, %s528
        %v531 = vld [vmem:[%s519] sm:$0xf]
        %v532 = vld [vmem:[%s13] sm:$0xff]
        %v533 = vld [vmem:[%s14] sm:$0xff]
        %v534 = vld [vmem:[%s14 + $0x8] sm:$0xff]
        %v535 = vld [vmem:[%s3] sm:$0xf]
        %v536 = vld [vmem:[%s3 + $0x4] sm:$0xf]
        %v537 = vld [vmem:[%s4] sm:$0xff]
        %v538 = vld [vmem:[%s4 + $0x8] sm:$0xff]
        %540 = vrot.lane.b32.xlu0 %v531, 1
        %v541 = vpop.permute.xlu0 %540
        %vm543 = vcmask 7168
        %v544 = vsel %vm543, 0.0, %v541
        %545 = vrot.lane.b32.xlu0 %v531, 127
        %v546 = vpop.permute.xlu0 %545
        %vm548 = vcmask 121856
        %v549 = vsel %vm548, %v546, 0.0
        %v550 = vrot.slane %v531, 4
        %vm552 = vcmask 1043456
        %v553 = vsel %vm552, %v544, %v550
        %v554 = vpack.c.bf16 %v549, %v553
        %556 = vset.pattern.permute.xlu0 0
        %557 = vperm.xlu0 %556, %v537
        %v558 = vpop.permute.xlu0 %557
        %561 = vset.pattern.permute.xlu0 0
        %562 = vperm.xlu0 %561, %v538
        %v563 = vpop.permute.xlu0 %562
        %v567 = vunpack.c.l.b16 %v535
        %v568 = vunpack.c.l.b16 %v536
        %v569 = vpack.c.b16 %v568, %v567
        %vm570 = vcmask 97280
        %v572 = vsel %vm570, %v569, 0
        %vm574 = vcmask 1045504
        %v576 = vsel %vm574, %v554, 0
        %578 = vmatprep.subr.bf16.mxu0 0
        %579 = vmatpush1.bf16.msra.mxu0 0
        %580 = vmatprep.subr.bf16.mxu0 0
        %581 = vmatpush1.bf16.msra.mxu0 0
        %582 = vmatprep.subr.bf16.mxu0 0
        %583 = vmatpush1.bf16.msra.mxu0 0
        %584 = vmatprep.subr.bf16.mxu0 0
        %585 = vmatpush1.bf16.msra.mxu0 0
        %586 = vmatprep.subr.bf16.mxu0 0
        %587 = vmatpush1.bf16.msra.mxu0 0
        %588 = vmatprep.subr.bf16.mxu0 0
        %589 = vmatpush1.bf16.msra.mxu0 0
        %590 = vmatprep.subr.bf16.mxu0 0
        %591 = vmatpush1.bf16.msra.mxu0 0
        %592 = vmatprep.subr.bf16.mxu0 0
        %593 = vmatpush1.bf16.msra.mxu0 %v576
        %594 = vmatprep.subr.bf16.mxu0 0
        %595 = vmatpush2.bf16.msra.mxu0 0
        %596 = vmatprep.subr.bf16.mxu0 0
        %597 = vmatpush2.bf16.msra.mxu0 0
        %598 = vmatprep.subr.bf16.mxu0 0
        %599 = vmatpush2.bf16.msra.mxu0 0
        %600 = vmatprep.subr.bf16.mxu0 0
        %601 = vmatpush2.bf16.msra.mxu0 0
        %602 = vmatprep.subr.bf16.mxu0 0
        %603 = vmatpush2.bf16.msra.mxu0 0
        %604 = vmatprep.subr.bf16.mxu0 0
        %605 = vmatpush2.bf16.msra.mxu0 0
        %606 = vmatprep.subr.bf16.mxu0 0
        %607 = vmatpush2.bf16.msra.mxu0 0
        %608 = vmatprep.subr.bf16.mxu0 0
        %609 = vmatpush2.bf16.msra.mxu0 0
        %610 = vmatprep.mubr.bf16.mxu0 0
        %611 = vmatmul.mubr.bf16.gmra.mxu0 %v572
        %v612 = vpop.f32.mrf.mxu0
        %v613 = vadd.f32 %v558, %v612
        %v614 = vpop.f32.mrf.mxu0
        %v615 = vpop.f32.mrf.mxu0
        %v616 = vadd.f32 %v563, %v615
        %v617 = vpop.f32.mrf.mxu0
        %618 = vdwg.mxu0
        %v619 = vld [vmem:[%s5] sm:$0xff]
        %v620 = vld [vmem:[%s5 + $0x8] sm:$0xff]
        %v621 = vld [vmem:[%s6] sm:$0xff]
        %v622 = vld [vmem:[%s6 + $0x8] sm:$0xff]
        %vm623 = vcmask 130048
        %v624 = vsel %vm623, %v613, 0.0
        %625 = vadd.xlane.f32.xlu0 %v624
        %v626 = vpop.xlane.xlu0 %625
        %v627 = vsel %vm623, %v616, 0.0
        %628 = vadd.xlane.f32.xlu0 %v627
        %v629 = vpop.xlane.xlu0 %628
        %v630 = vmul.f32 %v613, %v613
        %v631 = vmul.f32 %v616, %v616
        %v632 = vsel %vm623, %v630, 0.0
        %633 = vadd.xlane.f32.xlu0 %v632
        %v634 = vpop.xlane.xlu0 %633
        %v635 = vsel %vm623, %v631, 0.0
        %636 = vadd.xlane.f32.xlu0 %v635
        %v637 = vpop.xlane.xlu0 %636
        %v639 = vsel %vm623, %v532, 0
        %641 = vmatprep.subr.mxu0 0.0
        %642 = vmatpush1.msra.mxu0 0.0
        %643 = vmatprep.subr.mxu0 0.0
        %644 = vmatpush1.msra.mxu0 0.0
        %645 = vmatprep.subr.mxu0 0.0
        %646 = vmatpush1.msra.mxu0 0.0
        %647 = vmatprep.subr.mxu0 0.0
        %648 = vmatpush1.msra.mxu0 0.0
        %649 = vmatprep.subr.mxu0 0.0
        %650 = vmatpush1.msra.mxu0 0.0
        %651 = vmatprep.subr.mxu0 0.0
        %652 = vmatpush1.msra.mxu0 0.0
        %653 = vmatprep.subr.mxu0 0.0
        %654 = vmatpush1.msra.mxu0 0.0
        %655 = vmatprep.subr.mxu0 0.0
        %656 = vmatpush1.msra.mxu0 0.0
        %657 = vmatprep.subr.mxu0 0.0
        %658 = vmatpush1.msra.mxu0 0.0
        %659 = vmatprep.subr.mxu0 0.0
        %660 = vmatpush1.msra.mxu0 0.0
        %661 = vmatprep.subr.mxu0 0.0
        %662 = vmatpush1.msra.mxu0 0.0
        %663 = vmatprep.subr.mxu0 0.0
        %664 = vmatpush1.msra.mxu0 0.0
        %665 = vmatprep.subr.mxu0 0.0
        %666 = vmatpush1.msra.mxu0 0.0
        %667 = vmatprep.subr.mxu0 0.0
        %668 = vmatpush1.msra.mxu0 0.0
        %669 = vmatprep.subr.mxu0 0.0
        %670 = vmatpush1.msra.mxu0 %v629
        %671 = vmatprep.subr.mxu0 0.0
        %672 = vmatpush1.msra.mxu0 %v626
        %673 = vmatprep.subr.mxu0 0.0
        %674 = vmatpush2.msra.mxu0 0.0
        %675 = vmatprep.subr.mxu0 0.0
        %676 = vmatpush2.msra.mxu0 0.0
        %677 = vmatprep.subr.mxu0 0.0
        %678 = vmatpush2.msra.mxu0 0.0
        %679 = vmatprep.subr.mxu0 0.0
        %680 = vmatpush2.msra.mxu0 0.0
        %681 = vmatprep.subr.mxu0 0.0
        %682 = vmatpush2.msra.mxu0 0.0
        %683 = vmatprep.subr.mxu0 0.0
        %684 = vmatpush2.msra.mxu0 0.0
        %685 = vmatprep.subr.mxu0 0.0
        %686 = vmatpush2.msra.mxu0 0.0
        %687 = vmatprep.subr.mxu0 0.0
        %688 = vmatpush2.msra.mxu0 0.0
        %689 = vmatprep.subr.mxu0 0.0
        %690 = vmatpush2.msra.mxu0 0.0
        %691 = vmatprep.subr.mxu0 0.0
        %692 = vmatpush2.msra.mxu0 0.0
        %693 = vmatprep.subr.mxu0 0.0
        %694 = vmatpush2.msra.mxu0 0.0
        %695 = vmatprep.subr.mxu0 0.0
        %696 = vmatpush2.msra.mxu0 0.0
        %697 = vmatprep.subr.mxu0 0.0
        %698 = vmatpush2.msra.mxu0 0.0
        %699 = vmatprep.subr.mxu0 0.0
        %700 = vmatpush2.msra.mxu0 0.0
        %701 = vmatprep.subr.mxu0 0.0
        %702 = vmatpush2.msra.mxu0 0.0
        %703 = vmatprep.subr.mxu0 0.0
        %704 = vmatpush2.msra.mxu0 0.0
        %705 = vmatprep.mubr.f32.mxu0 0.0
        %706 = vmatmul.mubr.f32.gmra.mxu0 %v639
        %v707 = vpop.f32.mrf.mxu0
        %v708 = vadd.f32 0.0, %v707
        %v709 = vpop.f32.mrf.mxu0
        %710 = vdwg.mxu0
        %v711 = vmul.f32 %v708, 0.03125
        %712 = vmatprep.subr.mxu0 0.0
        %713 = vmatpush1.msra.mxu0 0.0
        %714 = vmatprep.subr.mxu0 0.0
        %715 = vmatpush1.msra.mxu0 0.0
        %716 = vmatprep.subr.mxu0 0.0
        %717 = vmatpush1.msra.mxu0 0.0
        %718 = vmatprep.subr.mxu0 0.0
        %719 = vmatpush1.msra.mxu0 0.0
        %720 = vmatprep.subr.mxu0 0.0
        %721 = vmatpush1.msra.mxu0 0.0
        %722 = vmatprep.subr.mxu0 0.0
        %723 = vmatpush1.msra.mxu0 0.0
        %724 = vmatprep.subr.mxu0 0.0
        %725 = vmatpush1.msra.mxu0 0.0
        %726 = vmatprep.subr.mxu0 0.0
        %727 = vmatpush1.msra.mxu0 0.0
        %728 = vmatprep.subr.mxu0 0.0
        %729 = vmatpush1.msra.mxu0 0.0
        %730 = vmatprep.subr.mxu0 0.0
        %731 = vmatpush1.msra.mxu0 0.0
        %732 = vmatprep.subr.mxu0 0.0
        %733 = vmatpush1.msra.mxu0 0.0
        %734 = vmatprep.subr.mxu0 0.0
        %735 = vmatpush1.msra.mxu0 0.0
        %736 = vmatprep.subr.mxu0 0.0
        %737 = vmatpush1.msra.mxu0 0.0
        %738 = vmatprep.subr.mxu0 0.0
        %739 = vmatpush1.msra.mxu0 0.0
        %740 = vmatprep.subr.mxu0 0.0
        %741 = vmatpush1.msra.mxu0 %v637
        %742 = vmatprep.subr.mxu0 0.0
        %743 = vmatpush1.msra.mxu0 %v634
        %744 = vmatprep.subr.mxu0 0.0
        %745 = vmatpush2.msra.mxu0 0.0
        %746 = vmatprep.subr.mxu0 0.0
        %747 = vmatpush2.msra.mxu0 0.0
        %748 = vmatprep.subr.mxu0 0.0
        %749 = vmatpush2.msra.mxu0 0.0
        %750 = vmatprep.subr.mxu0 0.0
        %751 = vmatpush2.msra.mxu0 0.0
        %752 = vmatprep.subr.mxu0 0.0
        %753 = vmatpush2.msra.mxu0 0.0
        %754 = vmatprep.subr.mxu0 0.0
        %755 = vmatpush2.msra.mxu0 0.0
        %756 = vmatprep.subr.mxu0 0.0
        %757 = vmatpush2.msra.mxu0 0.0
        %758 = vmatprep.subr.mxu0 0.0
        %759 = vmatpush2.msra.mxu0 0.0
        %760 = vmatprep.subr.mxu0 0.0
        %761 = vmatpush2.msra.mxu0 0.0
        %762 = vmatprep.subr.mxu0 0.0
        %763 = vmatpush2.msra.mxu0 0.0
        %764 = vmatprep.subr.mxu0 0.0
        %765 = vmatpush2.msra.mxu0 0.0
        %766 = vmatprep.subr.mxu0 0.0
        %767 = vmatpush2.msra.mxu0 0.0
        %768 = vmatprep.subr.mxu0 0.0
        %769 = vmatpush2.msra.mxu0 0.0
        %770 = vmatprep.subr.mxu0 0.0
        %771 = vmatpush2.msra.mxu0 0.0
        %772 = vmatprep.subr.mxu0 0.0
        %773 = vmatpush2.msra.mxu0 0.0
        %774 = vmatprep.subr.mxu0 0.0
        %775 = vmatpush2.msra.mxu0 0.0
        %776 = vmatprep.mubr.f32.mxu0 0.0
        %777 = vmatmul.mubr.f32.gmra.mxu0 %v639
        %v778 = vpop.f32.mrf.mxu0
        %v779 = vadd.f32 0.0, %v778
        %v780 = vpop.f32.mrf.mxu0
        %781 = vdwg.mxu0
        %v782 = vmul.f32 %v779, 0.03125
        %v783 = vmul.f32 %v711, %v711
        %v784 = vsub.f32 %v782, %v783
        %v785 = vmax.f32 %v784, 0.0
        %v786 = vadd.f32 %v785, 1e-05
        %v787 = vrsqrt.pop %v786
        %vm788 = vcmask 64512
        %v790 = vsel %vm788, %v533, 0
        %v793 = vsel %vm788, %v534, 0
        %795 = vmatprep.subr.mxu0 0.0
        %796 = vmatpush1.msra.mxu0 0.0
        %797 = vmatprep.subr.mxu0 0.0
        %798 = vmatpush1.msra.mxu0 0.0
        %799 = vmatprep.subr.mxu0 0.0
        %800 = vmatpush1.msra.mxu0 0.0
        %801 = vmatprep.subr.mxu0 0.0
        %802 = vmatpush1.msra.mxu0 0.0
        %803 = vmatprep.subr.mxu0 0.0
        %804 = vmatpush1.msra.mxu0 0.0
        %805 = vmatprep.subr.mxu0 0.0
        %806 = vmatpush1.msra.mxu0 0.0
        %807 = vmatprep.subr.mxu0 0.0
        %808 = vmatpush1.msra.mxu0 0.0
        %809 = vmatprep.subr.mxu0 0.0
        %810 = vmatpush1.msra.mxu0 0.0
        %811 = vmatprep.subr.mxu0 0.0
        %812 = vmatpush1.msra.mxu0 0.0
        %813 = vmatprep.subr.mxu0 0.0
        %814 = vmatpush1.msra.mxu0 0.0
        %815 = vmatprep.subr.mxu0 0.0
        %816 = vmatpush1.msra.mxu0 0.0
        %817 = vmatprep.subr.mxu0 0.0
        %818 = vmatpush1.msra.mxu0 0.0
        %819 = vmatprep.subr.mxu0 0.0
        %820 = vmatpush1.msra.mxu0 0.0
        %821 = vmatprep.subr.mxu0 0.0
        %822 = vmatpush1.msra.mxu0 0.0
        %823 = vmatprep.subr.mxu0 0.0
        %824 = vmatpush1.msra.mxu0 0.0
        %825 = vmatprep.subr.mxu0 0.0
        %826 = vmatpush1.msra.mxu0 %v711
        %827 = vmatprep.subr.mxu0 0.0
        %828 = vmatpush2.msra.mxu0 0.0
        %829 = vmatprep.subr.mxu0 0.0
        %830 = vmatpush2.msra.mxu0 0.0
        %831 = vmatprep.subr.mxu0 0.0
        %832 = vmatpush2.msra.mxu0 0.0
        %833 = vmatprep.subr.mxu0 0.0
        %834 = vmatpush2.msra.mxu0 0.0
        %835 = vmatprep.subr.mxu0 0.0
        %836 = vmatpush2.msra.mxu0 0.0
        %837 = vmatprep.subr.mxu0 0.0
        %838 = vmatpush2.msra.mxu0 0.0
        %839 = vmatprep.subr.mxu0 0.0
        %840 = vmatpush2.msra.mxu0 0.0
        %841 = vmatprep.subr.mxu0 0.0
        %842 = vmatpush2.msra.mxu0 0.0
        %843 = vmatprep.subr.mxu0 0.0
        %844 = vmatpush2.msra.mxu0 0.0
        %845 = vmatprep.subr.mxu0 0.0
        %846 = vmatpush2.msra.mxu0 0.0
        %847 = vmatprep.subr.mxu0 0.0
        %848 = vmatpush2.msra.mxu0 0.0
        %849 = vmatprep.subr.mxu0 0.0
        %850 = vmatpush2.msra.mxu0 0.0
        %851 = vmatprep.subr.mxu0 0.0
        %852 = vmatpush2.msra.mxu0 0.0
        %853 = vmatprep.subr.mxu0 0.0
        %854 = vmatpush2.msra.mxu0 0.0
        %855 = vmatprep.subr.mxu0 0.0
        %856 = vmatpush2.msra.mxu0 0.0
        %857 = vmatprep.subr.mxu0 0.0
        %858 = vmatpush2.msra.mxu0 0.0
        %859 = vmatprep.mubr.f32.mxu0 0.0
        %860 = vmatmul.mubr.f32.gmra.mxu0 %v790
        %v861 = vpop.f32.mrf.mxu0
        %v862 = vadd.f32 0.0, %v861
        %v863 = vpop.f32.mrf.mxu0
        %864 = vmatprep.mubr.f32.mxu0 0.0
        %865 = vmatmul.mubr.f32.gmra.mxu0 %v793
        %v866 = vpop.f32.mrf.mxu0
        %v867 = vadd.f32 0.0, %v866
        %v868 = vpop.f32.mrf.mxu0
        %869 = vdwg.mxu0
        %870 = vmatprep.subr.mxu0 0.0
        %871 = vmatpush1.msra.mxu0 0.0
        %872 = vmatprep.subr.mxu0 0.0
        %873 = vmatpush1.msra.mxu0 0.0
        %874 = vmatprep.subr.mxu0 0.0
        %875 = vmatpush1.msra.mxu0 0.0
        %876 = vmatprep.subr.mxu0 0.0
        %877 = vmatpush1.msra.mxu0 0.0
        %878 = vmatprep.subr.mxu0 0.0
        %879 = vmatpush1.msra.mxu0 0.0
        %880 = vmatprep.subr.mxu0 0.0
        %881 = vmatpush1.msra.mxu0 0.0
        %882 = vmatprep.subr.mxu0 0.0
        %883 = vmatpush1.msra.mxu0 0.0
        %884 = vmatprep.subr.mxu0 0.0
        %885 = vmatpush1.msra.mxu0 0.0
        %886 = vmatprep.subr.mxu0 0.0
        %887 = vmatpush1.msra.mxu0 0.0
        %888 = vmatprep.subr.mxu0 0.0
        %889 = vmatpush1.msra.mxu0 0.0
        %890 = vmatprep.subr.mxu0 0.0
        %891 = vmatpush1.msra.mxu0 0.0
        %892 = vmatprep.subr.mxu0 0.0
        %893 = vmatpush1.msra.mxu0 0.0
        %894 = vmatprep.subr.mxu0 0.0
        %895 = vmatpush1.msra.mxu0 0.0
        %896 = vmatprep.subr.mxu0 0.0
        %897 = vmatpush1.msra.mxu0 0.0
        %898 = vmatprep.subr.mxu0 0.0
        %899 = vmatpush1.msra.mxu0 0.0
        %900 = vmatprep.subr.mxu0 0.0
        %901 = vmatpush1.msra.mxu0 %v787
        %902 = vmatprep.subr.mxu0 0.0
        %903 = vmatpush2.msra.mxu0 0.0
        %904 = vmatprep.subr.mxu0 0.0
        %905 = vmatpush2.msra.mxu0 0.0
        %906 = vmatprep.subr.mxu0 0.0
        %907 = vmatpush2.msra.mxu0 0.0
        %908 = vmatprep.subr.mxu0 0.0
        %909 = vmatpush2.msra.mxu0 0.0
        %910 = vmatprep.subr.mxu0 0.0
        %911 = vmatpush2.msra.mxu0 0.0
        %912 = vmatprep.subr.mxu0 0.0
        %913 = vmatpush2.msra.mxu0 0.0
        %914 = vmatprep.subr.mxu0 0.0
        %915 = vmatpush2.msra.mxu0 0.0
        %916 = vmatprep.subr.mxu0 0.0
        %917 = vmatpush2.msra.mxu0 0.0
        %918 = vmatprep.subr.mxu0 0.0
        %919 = vmatpush2.msra.mxu0 0.0
        %920 = vmatprep.subr.mxu0 0.0
        %921 = vmatpush2.msra.mxu0 0.0
        %922 = vmatprep.subr.mxu0 0.0
        %923 = vmatpush2.msra.mxu0 0.0
        %924 = vmatprep.subr.mxu0 0.0
        %925 = vmatpush2.msra.mxu0 0.0
        %926 = vmatprep.subr.mxu0 0.0
        %927 = vmatpush2.msra.mxu0 0.0
        %928 = vmatprep.subr.mxu0 0.0
        %929 = vmatpush2.msra.mxu0 0.0
        %930 = vmatprep.subr.mxu0 0.0
        %931 = vmatpush2.msra.mxu0 0.0
        %932 = vmatprep.subr.mxu0 0.0
        %933 = vmatpush2.msra.mxu0 0.0
        %934 = vmatprep.mubr.f32.mxu0 0.0
        %935 = vmatmul.mubr.f32.gmra.mxu0 %v790
        %v936 = vpop.f32.mrf.mxu0
        %v937 = vadd.f32 0.0, %v936
        %v938 = vpop.f32.mrf.mxu0
        %939 = vmatprep.mubr.f32.mxu0 0.0
        %940 = vmatmul.mubr.f32.gmra.mxu0 %v793
        %v941 = vpop.f32.mrf.mxu0
        %v942 = vadd.f32 0.0, %v941
        %v943 = vpop.f32.mrf.mxu0
        %944 = vdwg.mxu0
        %946 = vset.pattern.permute.xlu0 0
        %947 = vperm.xlu0 %946, %v862
        %v948 = vpop.permute.xlu0 %947
        %951 = vset.pattern.permute.xlu0 0
        %952 = vperm.xlu0 %951, %v867
        %v953 = vpop.permute.xlu0 %952
        %v955 = vsub.f32 %v613, %v948
        %v956 = vsub.f32 %v616, %v953
        %958 = vset.pattern.permute.xlu0 0
        %959 = vperm.xlu0 %958, %v937
        %v960 = vpop.permute.xlu0 %959
        %963 = vset.pattern.permute.xlu0 0
        %964 = vperm.xlu0 %963, %v942
        %v965 = vpop.permute.xlu0 %964
        %v967 = vmul.f32 %v955, %v960
        %v968 = vmul.f32 %v956, %v965
        %970 = vset.pattern.permute.xlu0 0
        %971 = vperm.xlu0 %970, %v619
        %v972 = vpop.permute.xlu0 %971
        %975 = vset.pattern.permute.xlu0 0
        %976 = vperm.xlu0 %975, %v620
        %v977 = vpop.permute.xlu0 %976
        %v979 = vmul.f32 %v967, %v972
        %v980 = vmul.f32 %v968, %v977
        %982 = vset.pattern.permute.xlu0 0
        %983 = vperm.xlu0 %982, %v621
        %v984 = vpop.permute.xlu0 %983
        %987 = vset.pattern.permute.xlu0 0
        %988 = vperm.xlu0 %987, %v622
        %v989 = vpop.permute.xlu0 %988
        %v991 = vadd.f32 %v979, %v984
        %v992 = vadd.f32 %v980, %v989
        %v993 = vld [vmem:[%s524] sm:$0xff]
        %v994 = vld [vmem:[%s524 + $0x8] sm:$0xff]
        %v995 = vadd.f32 %v993, 1.0
        %v996 = vadd.f32 %v994, 1.0
        %998 = vset.pattern.permute.xlu0 0
        %999 = vperm.xlu0 %998, %v995
        %v1000 = vpop.permute.xlu0 %999
        %1003 = vset.pattern.permute.xlu0 0
        %1004 = vperm.xlu0 %1003, %v996
        %v1005 = vpop.permute.xlu0 %1004
        %v1007 = vmul.f32 %v991, %v1000
        %v1008 = vmul.f32 %v992, %v1005
        %v1009 = vld [vmem:[%s529] sm:$0xff]
        %v1010 = vld [vmem:[%s529 + $0x8] sm:$0xff]
        %1012 = vset.pattern.permute.xlu0 0
        %1013 = vperm.xlu0 %1012, %v1009
        %v1014 = vpop.permute.xlu0 %1013
        %1017 = vset.pattern.permute.xlu0 0
        %1018 = vperm.xlu0 %1017, %v1010
        %v1019 = vpop.permute.xlu0 %1018
        %v1021 = vadd.f32 %v1007, %v1014
        %v1022 = vadd.f32 %v1008, %v1019
        %v1023 = vxor.u32 %v1021, 2147483648
        %v1024 = vxor.u32 %v1022, 2147483648
        %v1025 = vmul.f32 %v1023, 1.442695
        %v1026 = vpow.pop %v1025
        %v1027 = vmul.f32 %v1024, 1.442695
        %v1028 = vpow.pop %v1027
        %v1029 = vadd.f32 %v1026, 1.0
        %v1030 = vadd.f32 %v1028, 1.0
        %v1031 = vrcp.pop %v1029
        %v1032 = vmul.f32 1.0, %v1031
        %v1033 = vrcp.pop %v1030
        %v1034 = vmul.f32 1.0, %v1033
        %v1035 = vmul.f32 %v1021, %v1032
        %v1036 = vmul.f32 %v1022, %v1034
        %v1037 = vld [vmem:[%s7] sm:$0xf]
        %v1038 = vld [vmem:[%s7 + $0x4] sm:$0xf]
        %v1039 = vld [vmem:[%s8] sm:$0xff]
        %v1040 = vld [vmem:[%s8 + $0x8] sm:$0xff]
        %1043 = vrot.lane.b32.xlu0 %v1035, 1
        %v1044 = vpop.permute.xlu0 %1043
        %1045 = vrot.lane.b32.xlu0 %v1036, 1
        %v1046 = vpop.permute.xlu0 %1045
        %v1049 = vsel %vm543, 0.0, %v1044
        %v1050 = vsel %vm543, 0.0, %v1046
        %1051 = vrot.lane.b32.xlu0 %v1035, 127
        %v1052 = vpop.permute.xlu0 %1051
        %1053 = vrot.lane.b32.xlu0 %v1036, 127
        %v1054 = vpop.permute.xlu0 %1053
        %v1057 = vsel %vm548, %v1052, 0.0
        %v1058 = vsel %vm548, %v1054, 0.0
        %v1059 = vpack.c.bf16 %v1050, %v1049
        %v1060 = vpack.c.bf16 %v1036, %v1035
        %v1061 = vpack.c.bf16 %v1058, %v1057
        %1063 = vset.pattern.permute.xlu0 0
        %1064 = vperm.xlu0 %1063, %v1039
        %v1065 = vpop.permute.xlu0 %1064
        %1068 = vset.pattern.permute.xlu0 0
        %1069 = vperm.xlu0 %1068, %v1040
        %v1070 = vpop.permute.xlu0 %1069
        %v1074 = vunpack.c.l.b16 %v1037
        %v1075 = vunpack.c.l.b16 %v1038
        %v1076 = vpack.c.b16 %v1075, %v1074
        %vm1077 = vcmask 392192
        %v1079 = vsel %vm1077, %v1076, 0
        %1081 = vmatprep.subr.bf16.mxu0 0
        %1082 = vmatpush1.bf16.msra.mxu0 0
        %1083 = vmatprep.subr.bf16.mxu0 0
        %1084 = vmatpush1.bf16.msra.mxu0 0
        %1085 = vmatprep.subr.bf16.mxu0 0
        %1086 = vmatpush1.bf16.msra.mxu0 0
        %1087 = vmatprep.subr.bf16.mxu0 0
        %1088 = vmatpush1.bf16.msra.mxu0 0
        %1089 = vmatprep.subr.bf16.mxu0 0
        %1090 = vmatpush1.bf16.msra.mxu0 0
        %1091 = vmatprep.subr.bf16.mxu0 0
        %1092 = vmatpush1.bf16.msra.mxu0 %v1061
        %1093 = vmatprep.subr.bf16.mxu0 0
        %1094 = vmatpush1.bf16.msra.mxu0 %v1060
        %1095 = vmatprep.subr.bf16.mxu0 0
        %1096 = vmatpush1.bf16.msra.mxu0 %v1059
        %1097 = vmatprep.subr.bf16.mxu0 0
        %1098 = vmatpush2.bf16.msra.mxu0 0
        %1099 = vmatprep.subr.bf16.mxu0 0
        %1100 = vmatpush2.bf16.msra.mxu0 0
        %1101 = vmatprep.subr.bf16.mxu0 0
        %1102 = vmatpush2.bf16.msra.mxu0 0
        %1103 = vmatprep.subr.bf16.mxu0 0
        %1104 = vmatpush2.bf16.msra.mxu0 0
        %1105 = vmatprep.subr.bf16.mxu0 0
        %1106 = vmatpush2.bf16.msra.mxu0 0
        %1107 = vmatprep.subr.bf16.mxu0 0
        %1108 = vmatpush2.bf16.msra.mxu0 0
        %1109 = vmatprep.subr.bf16.mxu0 0
        %1110 = vmatpush2.bf16.msra.mxu0 0
        %1111 = vmatprep.subr.bf16.mxu0 0
        %1112 = vmatpush2.bf16.msra.mxu0 0
        %1113 = vmatprep.mubr.bf16.mxu0 0
        %1114 = vmatmul.mubr.bf16.gmra.mxu0 %v1079
        %v1115 = vpop.f32.mrf.mxu0
        %v1116 = vadd.f32 %v1065, %v1115
        %v1117 = vpop.f32.mrf.mxu0
        %v1118 = vpop.f32.mrf.mxu0
        %v1119 = vadd.f32 %v1070, %v1118
        %v1120 = vpop.f32.mrf.mxu0
        %1121 = vdwg.mxu0
        %v1122 = vld [vmem:[%s9] sm:$0xff]
        %v1123 = vld [vmem:[%s9 + $0x8] sm:$0xff]
        %v1124 = vld [vmem:[%s10] sm:$0xff]
        %v1125 = vld [vmem:[%s10 + $0x8] sm:$0xff]
        %v1126 = vsel %vm623, %v1116, 0.0
        %1127 = vadd.xlane.f32.xlu0 %v1126
        %v1128 = vpop.xlane.xlu0 %1127
        %v1129 = vsel %vm623, %v1119, 0.0
        %1130 = vadd.xlane.f32.xlu0 %v1129
        %v1131 = vpop.xlane.xlu0 %1130
        %v1132 = vmul.f32 %v1116, %v1116
        %v1133 = vmul.f32 %v1119, %v1119
        %v1134 = vsel %vm623, %v1132, 0.0
        %1135 = vadd.xlane.f32.xlu0 %v1134
        %v1136 = vpop.xlane.xlu0 %1135
        %v1137 = vsel %vm623, %v1133, 0.0
        %1138 = vadd.xlane.f32.xlu0 %v1137
        %v1139 = vpop.xlane.xlu0 %1138
        %1140 = vmatprep.subr.mxu0 0.0
        %1141 = vmatpush1.msra.mxu0 0.0
        %1142 = vmatprep.subr.mxu0 0.0
        %1143 = vmatpush1.msra.mxu0 0.0
        %1144 = vmatprep.subr.mxu0 0.0
        %1145 = vmatpush1.msra.mxu0 0.0
        %1146 = vmatprep.subr.mxu0 0.0
        %1147 = vmatpush1.msra.mxu0 0.0
        %1148 = vmatprep.subr.mxu0 0.0
        %1149 = vmatpush1.msra.mxu0 0.0
        %1150 = vmatprep.subr.mxu0 0.0
        %1151 = vmatpush1.msra.mxu0 0.0
        %1152 = vmatprep.subr.mxu0 0.0
        %1153 = vmatpush1.msra.mxu0 0.0
        %1154 = vmatprep.subr.mxu0 0.0
        %1155 = vmatpush1.msra.mxu0 0.0
        %1156 = vmatprep.subr.mxu0 0.0
        %1157 = vmatpush1.msra.mxu0 0.0
        %1158 = vmatprep.subr.mxu0 0.0
        %1159 = vmatpush1.msra.mxu0 0.0
        %1160 = vmatprep.subr.mxu0 0.0
        %1161 = vmatpush1.msra.mxu0 0.0
        %1162 = vmatprep.subr.mxu0 0.0
        %1163 = vmatpush1.msra.mxu0 0.0
        %1164 = vmatprep.subr.mxu0 0.0
        %1165 = vmatpush1.msra.mxu0 0.0
        %1166 = vmatprep.subr.mxu0 0.0
        %1167 = vmatpush1.msra.mxu0 0.0
        %1168 = vmatprep.subr.mxu0 0.0
        %1169 = vmatpush1.msra.mxu0 %v1131
        %1170 = vmatprep.subr.mxu0 0.0
        %1171 = vmatpush1.msra.mxu0 %v1128
        %1172 = vmatprep.subr.mxu0 0.0
        %1173 = vmatpush2.msra.mxu0 0.0
        %1174 = vmatprep.subr.mxu0 0.0
        %1175 = vmatpush2.msra.mxu0 0.0
        %1176 = vmatprep.subr.mxu0 0.0
        %1177 = vmatpush2.msra.mxu0 0.0
        %1178 = vmatprep.subr.mxu0 0.0
        %1179 = vmatpush2.msra.mxu0 0.0
        %1180 = vmatprep.subr.mxu0 0.0
        %1181 = vmatpush2.msra.mxu0 0.0
        %1182 = vmatprep.subr.mxu0 0.0
        %1183 = vmatpush2.msra.mxu0 0.0
        %1184 = vmatprep.subr.mxu0 0.0
        %1185 = vmatpush2.msra.mxu0 0.0
        %1186 = vmatprep.subr.mxu0 0.0
        %1187 = vmatpush2.msra.mxu0 0.0
        %1188 = vmatprep.subr.mxu0 0.0
        %1189 = vmatpush2.msra.mxu0 0.0
        %1190 = vmatprep.subr.mxu0 0.0
        %1191 = vmatpush2.msra.mxu0 0.0
        %1192 = vmatprep.subr.mxu0 0.0
        %1193 = vmatpush2.msra.mxu0 0.0
        %1194 = vmatprep.subr.mxu0 0.0
        %1195 = vmatpush2.msra.mxu0 0.0
        %1196 = vmatprep.subr.mxu0 0.0
        %1197 = vmatpush2.msra.mxu0 0.0
        %1198 = vmatprep.subr.mxu0 0.0
        %1199 = vmatpush2.msra.mxu0 0.0
        %1200 = vmatprep.subr.mxu0 0.0
        %1201 = vmatpush2.msra.mxu0 0.0
        %1202 = vmatprep.subr.mxu0 0.0
        %1203 = vmatpush2.msra.mxu0 0.0
        %1204 = vmatprep.mubr.f32.mxu0 0.0
        %1205 = vmatmul.mubr.f32.gmra.mxu0 %v639
        %v1206 = vpop.f32.mrf.mxu0
        %v1207 = vadd.f32 0.0, %v1206
        %v1208 = vpop.f32.mrf.mxu0
        %1209 = vdwg.mxu0
        %v1210 = vmul.f32 %v1207, 0.03125
        %1211 = vmatprep.subr.mxu0 0.0
        %1212 = vmatpush1.msra.mxu0 0.0
        %1213 = vmatprep.subr.mxu0 0.0
        %1214 = vmatpush1.msra.mxu0 0.0
        %1215 = vmatprep.subr.mxu0 0.0
        %1216 = vmatpush1.msra.mxu0 0.0
        %1217 = vmatprep.subr.mxu0 0.0
        %1218 = vmatpush1.msra.mxu0 0.0
        %1219 = vmatprep.subr.mxu0 0.0
        %1220 = vmatpush1.msra.mxu0 0.0
        %1221 = vmatprep.subr.mxu0 0.0
        %1222 = vmatpush1.msra.mxu0 0.0
        %1223 = vmatprep.subr.mxu0 0.0
        %1224 = vmatpush1.msra.mxu0 0.0
        %1225 = vmatprep.subr.mxu0 0.0
        %1226 = vmatpush1.msra.mxu0 0.0
        %1227 = vmatprep.subr.mxu0 0.0
        %1228 = vmatpush1.msra.mxu0 0.0
        %1229 = vmatprep.subr.mxu0 0.0
        %1230 = vmatpush1.msra.mxu0 0.0
        %1231 = vmatprep.subr.mxu0 0.0
        %1232 = vmatpush1.msra.mxu0 0.0
        %1233 = vmatprep.subr.mxu0 0.0
        %1234 = vmatpush1.msra.mxu0 0.0
        %1235 = vmatprep.subr.mxu0 0.0
        %1236 = vmatpush1.msra.mxu0 0.0
        %1237 = vmatprep.subr.mxu0 0.0
        %1238 = vmatpush1.msra.mxu0 0.0
        %1239 = vmatprep.subr.mxu0 0.0
        %1240 = vmatpush1.msra.mxu0 %v1139
        %1241 = vmatprep.subr.mxu0 0.0
        %1242 = vmatpush1.msra.mxu0 %v1136
        %1243 = vmatprep.subr.mxu0 0.0
        %1244 = vmatpush2.msra.mxu0 0.0
        %1245 = vmatprep.subr.mxu0 0.0
        %1246 = vmatpush2.msra.mxu0 0.0
        %1247 = vmatprep.subr.mxu0 0.0
        %1248 = vmatpush2.msra.mxu0 0.0
        %1249 = vmatprep.subr.mxu0 0.0
        %1250 = vmatpush2.msra.mxu0 0.0
        %1251 = vmatprep.subr.mxu0 0.0
        %1252 = vmatpush2.msra.mxu0 0.0
        %1253 = vmatprep.subr.mxu0 0.0
        %1254 = vmatpush2.msra.mxu0 0.0
        %1255 = vmatprep.subr.mxu0 0.0
        %1256 = vmatpush2.msra.mxu0 0.0
        %1257 = vmatprep.subr.mxu0 0.0
        %1258 = vmatpush2.msra.mxu0 0.0
        %1259 = vmatprep.subr.mxu0 0.0
        %1260 = vmatpush2.msra.mxu0 0.0
        %1261 = vmatprep.subr.mxu0 0.0
        %1262 = vmatpush2.msra.mxu0 0.0
        %1263 = vmatprep.subr.mxu0 0.0
        %1264 = vmatpush2.msra.mxu0 0.0
        %1265 = vmatprep.subr.mxu0 0.0
        %1266 = vmatpush2.msra.mxu0 0.0
        %1267 = vmatprep.subr.mxu0 0.0
        %1268 = vmatpush2.msra.mxu0 0.0
        %1269 = vmatprep.subr.mxu0 0.0
        %1270 = vmatpush2.msra.mxu0 0.0
        %1271 = vmatprep.subr.mxu0 0.0
        %1272 = vmatpush2.msra.mxu0 0.0
        %1273 = vmatprep.subr.mxu0 0.0
        %1274 = vmatpush2.msra.mxu0 0.0
        %1275 = vmatprep.mubr.f32.mxu0 0.0
        %1276 = vmatmul.mubr.f32.gmra.mxu0 %v639
        %v1277 = vpop.f32.mrf.mxu0
        %v1278 = vadd.f32 0.0, %v1277
        %v1279 = vpop.f32.mrf.mxu0
        %1280 = vdwg.mxu0
        %v1281 = vmul.f32 %v1278, 0.03125
        %v1282 = vmul.f32 %v1210, %v1210
        %v1283 = vsub.f32 %v1281, %v1282
        %v1284 = vmax.f32 %v1283, 0.0
        %v1285 = vadd.f32 %v1284, 1e-05
        %v1286 = vrsqrt.pop %v1285
        %1287 = vmatprep.subr.mxu0 0.0
        %1288 = vmatpush1.msra.mxu0 0.0
        %1289 = vmatprep.subr.mxu0 0.0
        %1290 = vmatpush1.msra.mxu0 0.0
        %1291 = vmatprep.subr.mxu0 0.0
        %1292 = vmatpush1.msra.mxu0 0.0
        %1293 = vmatprep.subr.mxu0 0.0
        %1294 = vmatpush1.msra.mxu0 0.0
        %1295 = vmatprep.subr.mxu0 0.0
        %1296 = vmatpush1.msra.mxu0 0.0
        %1297 = vmatprep.subr.mxu0 0.0
        %1298 = vmatpush1.msra.mxu0 0.0
        %1299 = vmatprep.subr.mxu0 0.0
        %1300 = vmatpush1.msra.mxu0 0.0
        %1301 = vmatprep.subr.mxu0 0.0
        %1302 = vmatpush1.msra.mxu0 0.0
        %1303 = vmatprep.subr.mxu0 0.0
        %1304 = vmatpush1.msra.mxu0 0.0
        %1305 = vmatprep.subr.mxu0 0.0
        %1306 = vmatpush1.msra.mxu0 0.0
        %1307 = vmatprep.subr.mxu0 0.0
        %1308 = vmatpush1.msra.mxu0 0.0
        %1309 = vmatprep.subr.mxu0 0.0
        %1310 = vmatpush1.msra.mxu0 0.0
        %1311 = vmatprep.subr.mxu0 0.0
        %1312 = vmatpush1.msra.mxu0 0.0
        %1313 = vmatprep.subr.mxu0 0.0
        %1314 = vmatpush1.msra.mxu0 0.0
        %1315 = vmatprep.subr.mxu0 0.0
        %1316 = vmatpush1.msra.mxu0 0.0
        %1317 = vmatprep.subr.mxu0 0.0
        %1318 = vmatpush1.msra.mxu0 %v1210
        %1319 = vmatprep.subr.mxu0 0.0
        %1320 = vmatpush2.msra.mxu0 0.0
        %1321 = vmatprep.subr.mxu0 0.0
        %1322 = vmatpush2.msra.mxu0 0.0
        %1323 = vmatprep.subr.mxu0 0.0
        %1324 = vmatpush2.msra.mxu0 0.0
        %1325 = vmatprep.subr.mxu0 0.0
        %1326 = vmatpush2.msra.mxu0 0.0
        %1327 = vmatprep.subr.mxu0 0.0
        %1328 = vmatpush2.msra.mxu0 0.0
        %1329 = vmatprep.subr.mxu0 0.0
        %1330 = vmatpush2.msra.mxu0 0.0
        %1331 = vmatprep.subr.mxu0 0.0
        %1332 = vmatpush2.msra.mxu0 0.0
        %1333 = vmatprep.subr.mxu0 0.0
        %1334 = vmatpush2.msra.mxu0 0.0
        %1335 = vmatprep.subr.mxu0 0.0
        %1336 = vmatpush2.msra.mxu0 0.0
        %1337 = vmatprep.subr.mxu0 0.0
        %1338 = vmatpush2.msra.mxu0 0.0
        %1339 = vmatprep.subr.mxu0 0.0
        %1340 = vmatpush2.msra.mxu0 0.0
        %1341 = vmatprep.subr.mxu0 0.0
        %1342 = vmatpush2.msra.mxu0 0.0
        %1343 = vmatprep.subr.mxu0 0.0
        %1344 = vmatpush2.msra.mxu0 0.0
        %1345 = vmatprep.subr.mxu0 0.0
        %1346 = vmatpush2.msra.mxu0 0.0
        %1347 = vmatprep.subr.mxu0 0.0
        %1348 = vmatpush2.msra.mxu0 0.0
        %1349 = vmatprep.subr.mxu0 0.0
        %1350 = vmatpush2.msra.mxu0 0.0
        %1351 = vmatprep.mubr.f32.mxu0 0.0
        %1352 = vmatmul.mubr.f32.gmra.mxu0 %v790
        %v1353 = vpop.f32.mrf.mxu0
        %v1354 = vadd.f32 0.0, %v1353
        %v1355 = vpop.f32.mrf.mxu0
        %1356 = vmatprep.mubr.f32.mxu0 0.0
        %1357 = vmatmul.mubr.f32.gmra.mxu0 %v793
        %v1358 = vpop.f32.mrf.mxu0
        %v1359 = vadd.f32 0.0, %v1358
        %v1360 = vpop.f32.mrf.mxu0
        %1361 = vdwg.mxu0
        %1362 = vmatprep.subr.mxu0 0.0
        %1363 = vmatpush1.msra.mxu0 0.0
        %1364 = vmatprep.subr.mxu0 0.0
        %1365 = vmatpush1.msra.mxu0 0.0
        %1366 = vmatprep.subr.mxu0 0.0
        %1367 = vmatpush1.msra.mxu0 0.0
        %1368 = vmatprep.subr.mxu0 0.0
        %1369 = vmatpush1.msra.mxu0 0.0
        %1370 = vmatprep.subr.mxu0 0.0
        %1371 = vmatpush1.msra.mxu0 0.0
        %1372 = vmatprep.subr.mxu0 0.0
        %1373 = vmatpush1.msra.mxu0 0.0
        %1374 = vmatprep.subr.mxu0 0.0
        %1375 = vmatpush1.msra.mxu0 0.0
        %1376 = vmatprep.subr.mxu0 0.0
        %1377 = vmatpush1.msra.mxu0 0.0
        %1378 = vmatprep.subr.mxu0 0.0
        %1379 = vmatpush1.msra.mxu0 0.0
        %1380 = vmatprep.subr.mxu0 0.0
        %1381 = vmatpush1.msra.mxu0 0.0
        %1382 = vmatprep.subr.mxu0 0.0
        %1383 = vmatpush1.msra.mxu0 0.0
        %1384 = vmatprep.subr.mxu0 0.0
        %1385 = vmatpush1.msra.mxu0 0.0
        %1386 = vmatprep.subr.mxu0 0.0
        %1387 = vmatpush1.msra.mxu0 0.0
        %1388 = vmatprep.subr.mxu0 0.0
        %1389 = vmatpush1.msra.mxu0 0.0
        %1390 = vmatprep.subr.mxu0 0.0
        %1391 = vmatpush1.msra.mxu0 0.0
        %1392 = vmatprep.subr.mxu0 0.0
        %1393 = vmatpush1.msra.mxu0 %v1286
        %1394 = vmatprep.subr.mxu0 0.0
        %1395 = vmatpush2.msra.mxu0 0.0
        %1396 = vmatprep.subr.mxu0 0.0
        %1397 = vmatpush2.msra.mxu0 0.0
        %1398 = vmatprep.subr.mxu0 0.0
        %1399 = vmatpush2.msra.mxu0 0.0
        %1400 = vmatprep.subr.mxu0 0.0
        %1401 = vmatpush2.msra.mxu0 0.0
        %1402 = vmatprep.subr.mxu0 0.0
        %1403 = vmatpush2.msra.mxu0 0.0
        %1404 = vmatprep.subr.mxu0 0.0
        %1405 = vmatpush2.msra.mxu0 0.0
        %1406 = vmatprep.subr.mxu0 0.0
        %1407 = vmatpush2.msra.mxu0 0.0
        %1408 = vmatprep.subr.mxu0 0.0
        %1409 = vmatpush2.msra.mxu0 0.0
        %1410 = vmatprep.subr.mxu0 0.0
        %1411 = vmatpush2.msra.mxu0 0.0
        %1412 = vmatprep.subr.mxu0 0.0
        %1413 = vmatpush2.msra.mxu0 0.0
        %1414 = vmatprep.subr.mxu0 0.0
        %1415 = vmatpush2.msra.mxu0 0.0
        %1416 = vmatprep.subr.mxu0 0.0
        %1417 = vmatpush2.msra.mxu0 0.0
        %1418 = vmatprep.subr.mxu0 0.0
        %1419 = vmatpush2.msra.mxu0 0.0
        %1420 = vmatprep.subr.mxu0 0.0
        %1421 = vmatpush2.msra.mxu0 0.0
        %1422 = vmatprep.subr.mxu0 0.0
        %1423 = vmatpush2.msra.mxu0 0.0
        %1424 = vmatprep.subr.mxu0 0.0
        %1425 = vmatpush2.msra.mxu0 0.0
        %1426 = vmatprep.mubr.f32.mxu0 0.0
        %1427 = vmatmul.mubr.f32.gmra.mxu0 %v790
        %v1428 = vpop.f32.mrf.mxu0
        %v1429 = vadd.f32 0.0, %v1428
        %v1430 = vpop.f32.mrf.mxu0
        %1431 = vmatprep.mubr.f32.mxu0 0.0
        %1432 = vmatmul.mubr.f32.gmra.mxu0 %v793
        %v1433 = vpop.f32.mrf.mxu0
        %v1434 = vadd.f32 0.0, %v1433
        %v1435 = vpop.f32.mrf.mxu0
        %1436 = vdwg.mxu0
        %1438 = vset.pattern.permute.xlu0 0
        %1439 = vperm.xlu0 %1438, %v1354
        %v1440 = vpop.permute.xlu0 %1439
        %1443 = vset.pattern.permute.xlu0 0
        %1444 = vperm.xlu0 %1443, %v1359
        %v1445 = vpop.permute.xlu0 %1444
        %v1447 = vsub.f32 %v1116, %v1440
        %v1448 = vsub.f32 %v1119, %v1445
        %1450 = vset.pattern.permute.xlu0 0
        %1451 = vperm.xlu0 %1450, %v1429
        %v1452 = vpop.permute.xlu0 %1451
        %1455 = vset.pattern.permute.xlu0 0
        %1456 = vperm.xlu0 %1455, %v1434
        %v1457 = vpop.permute.xlu0 %1456
        %v1459 = vmul.f32 %v1447, %v1452
        %v1460 = vmul.f32 %v1448, %v1457
        %1462 = vset.pattern.permute.xlu0 0
        %1463 = vperm.xlu0 %1462, %v1122
        %v1464 = vpop.permute.xlu0 %1463
        %1467 = vset.pattern.permute.xlu0 0
        %1468 = vperm.xlu0 %1467, %v1123
        %v1469 = vpop.permute.xlu0 %1468
        %v1471 = vmul.f32 %v1459, %v1464
        %v1472 = vmul.f32 %v1460, %v1469
        %1474 = vset.pattern.permute.xlu0 0
        %1475 = vperm.xlu0 %1474, %v1124
        %v1476 = vpop.permute.xlu0 %1475
        %1479 = vset.pattern.permute.xlu0 0
        %1480 = vperm.xlu0 %1479, %v1125
        %v1481 = vpop.permute.xlu0 %1480
        %v1483 = vadd.f32 %v1471, %v1476
        %v1484 = vadd.f32 %v1472, %v1481
        %v1485 = vxor.u32 %v1483, 2147483648
        %v1486 = vxor.u32 %v1484, 2147483648
        %v1487 = vmul.f32 %v1485, 1.442695
        %v1488 = vpow.pop %v1487
        %v1489 = vmul.f32 %v1486, 1.442695
        %v1490 = vpow.pop %v1489
        %v1491 = vadd.f32 %v1488, 1.0
        %v1492 = vadd.f32 %v1490, 1.0
        %v1493 = vrcp.pop %v1491
        %v1494 = vmul.f32 1.0, %v1493
        %v1495 = vrcp.pop %v1492
        %v1496 = vmul.f32 1.0, %v1495
        %v1497 = vmul.f32 %v1483, %v1494
        %v1498 = vmul.f32 %v1484, %v1496
        %v1499 = vld [vmem:[%s11] sm:$0xf]
        %v1500 = vld [vmem:[%s11 + $0x4] sm:$0xf]
        %v1501 = vpack.c.bf16 %v531, %v531
        %v1502 = vld [vmem:[%s12] sm:$0xff]
        %v1503 = vld [vmem:[%s12 + $0x8] sm:$0xff]
        %1505 = vset.pattern.permute.xlu0 0
        %1506 = vperm.xlu0 %1505, %v1502
        %v1507 = vpop.permute.xlu0 %1506
        %1510 = vset.pattern.permute.xlu0 0
        %1511 = vperm.xlu0 %1510, %v1503
        %v1512 = vpop.permute.xlu0 %1511
        %v1516 = vunpack.c.l.b16 %v1499
        %v1517 = vunpack.c.l.b16 %v1500
        %v1518 = vpack.c.b16 %v1517, %v1516
        %vm1519 = vcmask 31744
        %v1521 = vsel %vm1519, %v1518, 0
        %vm1523 = vcmask 1041408
        %v1525 = vsel %vm1523, %v1501, 0
        %1527 = vmatprep.subr.bf16.mxu0 0
        %1528 = vmatpush1.bf16.msra.mxu0 0
        %1529 = vmatprep.subr.bf16.mxu0 0
        %1530 = vmatpush1.bf16.msra.mxu0 0
        %1531 = vmatprep.subr.bf16.mxu0 0
        %1532 = vmatpush1.bf16.msra.mxu0 0
        %1533 = vmatprep.subr.bf16.mxu0 0
        %1534 = vmatpush1.bf16.msra.mxu0 0
        %1535 = vmatprep.subr.bf16.mxu0 0
        %1536 = vmatpush1.bf16.msra.mxu0 0
        %1537 = vmatprep.subr.bf16.mxu0 0
        %1538 = vmatpush1.bf16.msra.mxu0 0
        %1539 = vmatprep.subr.bf16.mxu0 0
        %1540 = vmatpush1.bf16.msra.mxu0 0
        %1541 = vmatprep.subr.bf16.mxu0 0
        %1542 = vmatpush1.bf16.msra.mxu0 %v1525
        %1543 = vmatprep.subr.bf16.mxu0 0
        %1544 = vmatpush2.bf16.msra.mxu0 0
        %1545 = vmatprep.subr.bf16.mxu0 0
        %1546 = vmatpush2.bf16.msra.mxu0 0
        %1547 = vmatprep.subr.bf16.mxu0 0
        %1548 = vmatpush2.bf16.msra.mxu0 0
        %1549 = vmatprep.subr.bf16.mxu0 0
        %1550 = vmatpush2.bf16.msra.mxu0 0
        %1551 = vmatprep.subr.bf16.mxu0 0
        %1552 = vmatpush2.bf16.msra.mxu0 0
        %1553 = vmatprep.subr.bf16.mxu0 0
        %1554 = vmatpush2.bf16.msra.mxu0 0
        %1555 = vmatprep.subr.bf16.mxu0 0
        %1556 = vmatpush2.bf16.msra.mxu0 0
        %1557 = vmatprep.subr.bf16.mxu0 0
        %1558 = vmatpush2.bf16.msra.mxu0 0
        %1559 = vmatprep.mubr.bf16.mxu0 0
        %1560 = vmatmul.mubr.bf16.gmra.mxu0 %v1521
        %v1561 = vpop.f32.mrf.mxu0
        %v1562 = vadd.f32 %v1507, %v1561
        %v1563 = vpop.f32.mrf.mxu0
        %v1564 = vpop.f32.mrf.mxu0
        %v1565 = vadd.f32 %v1512, %v1564
        %v1566 = vpop.f32.mrf.mxu0
        %1567 = vdwg.mxu0
        %v1568 = vadd.f32 %v1497, %v1562
        %v1569 = vadd.f32 %v1498, %v1565
        %1570 = vst.msk [vmem:[%s515] sm:$0xff] %vm623, %v1568
        %1571 = vst.msk [vmem:[%s515 + $0x8] sm:$0xff] %vm623, %v1569
        %s1572 = sand.u32 %s367, 1
        %s1573 = scalar_lea.sflag [#allocation3], %s1572
        %s1574 = sand.u32 %s367, 1
        %s1575 = smul.addr %s1574, 16
        %s1576 = scalar_lea.vmem [#allocation2], %s1575
        // Predicated region
        $region81: #{tpu_custom_call.1} parent=79 // pred_check
          %p1577 = pneg %p377
        $region82: #{tpu_custom_call.1} parent=79 // pred_check_branch
          %1579 = sbr.rel (%p1577) target = $region84
        $region83: #{tpu_custom_call.1} parent=79 // pred_region
          %s1581 = ssub.s32 256, 256
          %1582 = vsyncadd %s1573, %s1581
          %s1583 = smul.addr %s29, 2
          %s1584 = smul.addr %s1583, 128
          %s1585 = scalar_lea.hbm %s15, %s1584
          %s1586 = sshll.u32 %s1576, 4
          %s1587 = int_to_ptr.vmem [resolvable:$true] %s1586
          %1592 = dma.vmem_to_hbm [thread:$0]  %s1587, 256, %s1585, %s1573, 128, 128, 8
        $region84: #{tpu_custom_call.1} parent=79 // pred_fallthru
          _
      $region80: #{tpu_custom_call.1} parent=5 // pred_fallthru
        _
      %p1593 = scmp.le.s32.totalorder 2, %s24
      // Predicated region
      $region85: #{tpu_custom_call.1} parent=5 // pred_check
        %p1594 = pneg %p1593
      $region86: #{tpu_custom_call.1} parent=5 // pred_check_branch
        %1596 = sbr.rel (%p1594) target = $region88
      $region87: #{tpu_custom_call.1} parent=5 // pred_region
        %s1597 = ssub.s32 %s24, 2
        // Predicated region
        $region89: #{tpu_custom_call.1} parent=87 // pred_check
          %p1598 = pneg %p383
        $region90: #{tpu_custom_call.1} parent=87 // pred_check_branch
          %1600 = sbr.rel (%p1598) target = $region92
        $region91: #{tpu_custom_call.1} parent=87 // pred_region
          %s1601 = sand.u32 %s368, 1
          %s1602 = scalar_lea.sflag [#allocation3], %s1601
          %s1603 = sand.u32 %s368, 1
          %s1604 = smul.addr %s1603, 16
          %s1605 = scalar_lea.vmem [#allocation2], %s1604
          %1606 = dma.done %s1602, 256
        $region92: #{tpu_custom_call.1} parent=87 // pred_fallthru
          _
      $region88: #{tpu_custom_call.1} parent=5 // pred_fallthru
        _
    $region6: #{tpu_custom_call.1} parent=1 // loop_footer
      %s28 = sadd.s32 1, %s24
    $region7: #{tpu_custom_call.1} parent=1 // loop_footer_branch
      %23 = sbr.rel target = $region3
    $region8: #{tpu_custom_call.1} parent=1 // loop_exit
      _
    %1607 = vsyncpa [#allocation3], 1
    %s1608 = scalar_lea.sflag [#allocation3], 1
    %1609 = vsyncpa %s1608, 1

</llo_original>
